<compile_context>
chip_gen: v7x
topology: tpu7x:2x2x1
jax: 0.10.0
libtpu: 0.0.40
codegen_flags: <defaults>
</compile_context>

<pallas_src>
import functools

import jax
import jax.numpy as jnp
import numpy as np
from jax.experimental import pallas as pl
from jax.experimental.pallas import tpu as pltpu

# ---------------- problem sizes (small, consistent with the forward) --------
N = 128          # number of sample points
C = 4            # number of sub-modules / centroids
F = 32           # per-point feature dim fed to sub-modules (x[:, 3:])
D = 3 + F        # full input dim (xyz + features)
H = 32           # hidden width of each synthetic sub-module MLP  (C*H == 128)
O = 4            # sub-module output dim (rgb + sigma)
BOUNDARY_MARGIN = 2.0


def _round_up(v, m):
    return ((v + m - 1) // m) * m


# ---------------- Pallas kernel ---------------------------------------------
def mega_nerf_kernel(xyz_ref, feat_ref, cneg2_ref, c2_ref, expand_ref,
                     w1f_ref, b1f_ref, w2f_ref, b2_ref, out_ref, *, margin):
    xyz = xyz_ref[...]                                          # (TN, 3) f32

    # ---- squared distances to all centroids, lane-dense, one tiny MXU op ---
    # d2 = ||x||^2 - 2 x.c + ||c||^2 ;  cneg2 = -2*centroids^T, c2 = ||c||^2.
    # Clamp at 0: cancellation can produce tiny negatives when x ~= centroid.
    x2 = jnp.sum(xyz * xyz, axis=-1, keepdims=True)             # (TN, 1)
    d2 = x2 + jnp.dot(xyz, cneg2_ref[...],
                      preferred_element_type=jnp.float32) + c2_ref[...]
    d2 = jnp.maximum(d2, 0.0)                                   # (TN, C)

    # dist > margin*min_dist  <=>  d2 > margin^2 * d2_min   (all >= 0)
    d2_min = jnp.min(d2, axis=-1, keepdims=True)                # (TN, 1)
    # 1/(sqrt(d2)+1e-8) -> rsqrt(d2+1e-16): identical at d2==0, negligible
    # difference elsewhere; single EUP op instead of sqrt + divide.
    inv = jnp.where(d2 > (margin * margin) * d2_min, 0.0,
                    jax.lax.rsqrt(d2 + 1e-16))                  # (TN, C)
    # exact normalization (min-distance cluster always passes -> denom > 0)
    w = inv / jnp.sum(inv, axis=-1, keepdims=True)              # (TN, C)

    # ---- fused sub-module layer 1: one lane-dense (F, C*H) matmul ----------
    h = jnp.dot(feat_ref[...], w1f_ref[...],
                preferred_element_type=jnp.float32)
    h = jnp.maximum(h + b1f_ref[...], 0.0)                      # (TN, C*H)

    # blend weights expanded to (TN, C*H) with one block-one-hot matmul (MXU)
    w_exp = jnp.dot(w, expand_ref[...], preferred_element_type=jnp.float32)
    hw = h * w_exp

    # ---- fused layer 2 + blended biases: two matmuls, no per-cluster loop --
    out = jnp.dot(hw.astype(w2f_ref.dtype), w2f_ref[...],
                  preferred_element_type=jnp.float32)           # (TN, O)
    out = out + jnp.dot(w, b2_ref[...],                         # sum_i w_i*b2[i]
                        preferred_element_type=jnp.float32)

    # lane-dense store: (TN, O) -> (TN*O/128, 128) row-major when the output
    # block was declared that way (the reshape is a no-op in the fallback).
    out_ref[...] = out.reshape(out_ref.shape).astype(out_ref.dtype)


# ---------------- wrapper -----------------------------------------------------
def mega_nerf_forward(x, centroids, w1, b1, w2, b2, *,
                      margin=BOUNDARY_MARGIN, tile_n=None,
                      mxu_dtype=jnp.bfloat16, lane_dense_out=True):
    """x: (N, 3+F) f32, centroids: (C, 3), sub-module MLP params stacked over C.

    mxu_dtype: dtype of the MXU operands (feat / w1 / w2).  bfloat16 by
    default on every TPU generation -- accumulation and all elementwise /
    distance / blend-weight math stays float32.  Pass jnp.float32 for a
    bit-accurate run.  xyz stays float32 (distance precision), which is why
    xyz / feat are fed as two separate streams instead of one merged block.
    """
    n, d = x.shape
    f = d - 3
    c, _, hd = w1.shape
    o = w2.shape[-1]
    ch = c * hd

    lane_dense = lane_dense_out and (o <= 128) and (128 % o == 0)
    group = (128 // o) if lane_dense else 8     # logical rows per 128-lane out row

    # --- tiling: one big tile at small N (the grid is a serial loop on
    # v5e/v6e and megacore dispatch overhead dominates tiny tiles on v7x);
    # cdiv grid with 1024-row tiles otherwise.  At today's sizes VMEM is
    # nowhere near any limit; if C*H or tile_n scale up, re-derive the budget
    # (v7x: 64 MiB physical VMEM vs 128 MiB on v5e/v6e) and set
    # pltpu.CompilerParams(vmem_limit_bytes=...) explicitly.
    n_al = _round_up(n, group)
    if tile_n is None:
        tile_n = min(1024, n_al)
    tile_n = _round_up(tile_n, group)
    grid_n = pl.cdiv(n_al, tile_n)
    if lane_dense and grid_n > 1 and (tile_n // group) % 8 != 0:
        # keep the lane-dense output block sublane-aligned when tiled
        tile_n = _round_up(tile_n, 8 * group)
        grid_n = pl.cdiv(n_al, tile_n)

    xyz = x[:, :3].astype(jnp.float32)          # distances / weights stay f32
    feat = x[:, 3:].astype(mxu_dtype)           # xyz_real=True -> x[:, 3:]
    if n_al != n:                               # <= 31-row tail pad only
        xyz = jnp.pad(xyz, ((0, n_al - n), (0, 0)))
        feat = jnp.pad(feat, ((0, n_al - n), (0, 0)))

    cf = centroids.astype(jnp.float32)
    cneg2 = -2.0 * cf.T                                          # (3, C)
    c2 = jnp.sum(cf * cf, axis=-1)[None, :]                      # (1, C)
    expand = jnp.kron(jnp.eye(c, dtype=jnp.float32),
                      jnp.ones((1, hd), jnp.float32))            # (C, C*H)
    w1f = jnp.transpose(w1, (1, 0, 2)).reshape(f, ch).astype(mxu_dtype)
    b1f = b1.reshape(1, ch).astype(jnp.float32)
    w2f = w2.reshape(ch, o).astype(mxu_dtype)
    b2f = b2.astype(jnp.float32)

    kernel = functools.partial(mega_nerf_kernel, margin=float(margin))
    bcast = lambda i: (0, 0)                     # weights: one resident block
    in_specs = [
        pl.BlockSpec((tile_n, 3), lambda i: (i, 0)),   # xyz
        pl.BlockSpec((tile_n, f), lambda i: (i, 0)),   # feat
        pl.BlockSpec((3, c), bcast),                   # -2 * centroids^T
        pl.BlockSpec((1, c), bcast),                   # ||c||^2
        pl.BlockSpec((c, ch), bcast),                  # block one-hot expand
        pl.BlockSpec((f, ch), bcast),                  # fused W1
        pl.BlockSpec((1, ch), bcast),                  # fused b1
        pl.BlockSpec((ch, o), bcast),                  # fused W2
        pl.BlockSpec((c, o), bcast),                   # b2 (blended in-kernel)
    ]

    def call(dense):
        if dense:
            out_shape = jax.ShapeDtypeStruct(
                (grid_n * tile_n // group, 128), jnp.float32)
            out_spec = pl.BlockSpec((tile_n // group, 128), lambda i: (i, 0))
        else:
            out_shape = jax.ShapeDtypeStruct((grid_n * tile_n, o), jnp.float32)
            out_spec = pl.BlockSpec((tile_n, o), lambda i: (i, 0))
        return pl.pallas_call(
            kernel,
            out_shape=out_shape,
            grid=(grid_n,),
            in_specs=in_specs,
            out_specs=out_spec,
            compiler_params=pltpu.CompilerParams(
                dimension_semantics=("parallel",)),
        )(xyz, feat, cneg2, c2, expand, w1f, b1f, w2f, b2f)

    if lane_dense:
        try:
            out = call(True).reshape(grid_n * tile_n, o)   # free row-major view
        except Exception:
            # If the in-kernel (TN,O)->(TN*O/128,128) reshape does not lower
            # on this jaxlib, fall back to the masked (TN, O) store.
            out = call(False)
    else:
        out = call(False)
    return out[:n]


# ---------------- pure-JAX reference (mirrors the PyTorch forward) ----------
def mega_nerf_ref(x, centroids, w1, b1, w2, b2, margin=BOUNDARY_MARGIN):
    xyz = x[:, :3]
    feat = x[:, 3:]
    dist = jnp.sqrt(jnp.sum((xyz[:, None, :] - centroids[None, :, :]) ** 2, -1))
    inv = 1.0 / (dist + 1e-8)
    dmin = jnp.min(dist, axis=1, keepdims=True)
    inv = jnp.where(dist > margin * dmin, 0.0, inv)
    weights = inv / jnp.sum(inv, axis=-1, keepdims=True)
    res = jnp.zeros((x.shape[0], w2.shape[-1]), jnp.float32)
    hi = jax.lax.Precision.HIGHEST
    for i in range(centroids.shape[0]):
        h = jnp.maximum(jnp.dot(feat, w1[i], precision=hi) + b1[i], 0.0)
        oi = jnp.dot(h, w2[i], precision=hi) + b2[i]
        res = res + oi * weights[:, i:i + 1]
    return res


if __name__ == "__main__":
    key = jax.random.PRNGKey(0)
    k_x, k_c, k_w1, k_b1, k_w2, k_b2 = jax.random.split(key, 6)

    x = jax.random.normal(k_x, (N, D), jnp.float32)
    centroids = jax.random.normal(k_c, (C, 3), jnp.float32) * 2.0
    # deterministic synthetic sub-module (MLP) parameters, stacked over C
    w1 = jax.random.normal(k_w1, (C, F, H), jnp.float32) * 0.1
    b1 = jax.random.normal(k_b1, (C, H), jnp.float32) * 0.01
    w2 = jax.random.normal(k_w2, (C, H, O), jnp.float32) * 0.1
    b2 = jax.random.normal(k_b2, (C, O), jnp.float32) * 0.01

    ref = mega_nerf_ref(x, centroids, w1, b1, w2, b2)

    # 1) algorithmic check with f32 MXU operands.  Tolerance covers the TPU
    #    MXU's bf16-pass handling of f32 matmuls; any real bug (weights,
    #    fusion, output reshape) produces O(1) errors and is caught.
    out_f32 = jax.block_until_ready(
        mega_nerf_forward(x, centroids, w1, b1, w2, b2, mxu_dtype=jnp.float32))
    np.testing.assert_allclose(np.asarray(out_f32), np.asarray(ref),
                               rtol=1e-2, atol=2e-3)

    # 2) production default: bf16 MXU operands, f32 accumulate / weight math.
    out = jax.block_until_ready(mega_nerf_forward(x, centroids, w1, b1, w2, b2))
    np.testing.assert_allclose(np.asarray(out), np.asarray(ref),
                               rtol=2e-2, atol=1e-2)

    print("KERNEL_OK")
</pallas_src>

<mosaic_0001>
module attributes {stable_mosaic.version = 11 : i64} {
  func.func @mega_nerf_kernel(%arg0: i32, %arg1: memref<128x3xf32, #tpu.memory_space<vmem>>, %arg2: memref<128x32xf32, #tpu.memory_space<vmem>>, %arg3: memref<3x4xf32, #tpu.memory_space<vmem>>, %arg4: memref<1x4xf32, #tpu.memory_space<vmem>>, %arg5: memref<4x128xf32, #tpu.memory_space<vmem>>, %arg6: memref<32x128xf32, #tpu.memory_space<vmem>>, %arg7: memref<1x128xf32, #tpu.memory_space<vmem>>, %arg8: memref<128x4xf32, #tpu.memory_space<vmem>>, %arg9: memref<4x4xf32, #tpu.memory_space<vmem>>, %arg10: memref<4x128xf32, #tpu.memory_space<vmem>>) attributes {dimension_semantics = [#tpu.dimension_semantics<parallel>], iteration_bounds = array<i64: 1>, scalar_prefetch = 0 : i64, scratch_operands = 0 : i64, tpu.core_type = #tpu.core_type<tc>, window_params = [{transform_indices = @transform_0, window_bounds = array<i64: 128, 3>}, {transform_indices = @transform_1, window_bounds = array<i64: 128, 32>}, {pipeline_mode = #tpu.pipeline_mode<synchronous>, transform_indices = @transform_2, window_bounds = array<i64: 3, 4>}, {pipeline_mode = #tpu.pipeline_mode<synchronous>, transform_indices = @transform_3, window_bounds = array<i64: 1, 4>}, {pipeline_mode = #tpu.pipeline_mode<synchronous>, transform_indices = @transform_4, window_bounds = array<i64: 4, 128>}, {pipeline_mode = #tpu.pipeline_mode<synchronous>, transform_indices = @transform_5, window_bounds = array<i64: 32, 128>}, {pipeline_mode = #tpu.pipeline_mode<synchronous>, transform_indices = @transform_6, window_bounds = array<i64: 1, 128>}, {pipeline_mode = #tpu.pipeline_mode<synchronous>, transform_indices = @transform_7, window_bounds = array<i64: 128, 4>}, {pipeline_mode = #tpu.pipeline_mode<synchronous>, transform_indices = @transform_8, window_bounds = array<i64: 4, 4>}, {transform_indices = @transform_9, window_bounds = array<i64: 4, 128>}]} {
    %c0 = arith.constant 0 : index
    %c0_0 = arith.constant 0 : index
    %0 = vector.load %arg1[%c0, %c0_0] : memref<128x3xf32, #tpu.memory_space<vmem>>, vector<128x3xf32>
    %1 = arith.mulf %0, %0 : vector<128x3xf32>
    %cst = arith.constant dense<0.000000e+00> : vector<128xf32>
    %2 = vector.multi_reduction <add>, %1, %cst [1] : vector<128x3xf32> to vector<128xf32>
    %3 = vector.shape_cast %2 : vector<128xf32> to vector<128x1xf32>
    %c0_1 = arith.constant 0 : index
    %c0_2 = arith.constant 0 : index
    %4 = vector.load %arg3[%c0_1, %c0_2] : memref<3x4xf32, #tpu.memory_space<vmem>>, vector<3x4xf32>
    %cst_3 = arith.constant dense<0.000000e+00> : vector<128x4xf32>
    %5 = tpu.matmul %0, %4, %cst_3 {dimension_numbers = #tpu.dot_dimension_numbers<[1], [0], [0], [1], [0, 0, 1, 1], [], []>} : vector<128x3xf32>, vector<3x4xf32>, vector<128x4xf32> -> vector<128x4xf32>
    %6 = vector.broadcast %3 : vector<128x1xf32> to vector<128x4xf32>
    %7 = arith.addf %6, %5 : vector<128x4xf32>
    %c0_4 = arith.constant 0 : index
    %c0_5 = arith.constant 0 : index
    %8 = vector.load %arg4[%c0_4, %c0_5] : memref<1x4xf32, #tpu.memory_space<vmem>>, vector<1x4xf32>
    %9 = vector.broadcast %8 : vector<1x4xf32> to vector<128x4xf32>
    %10 = arith.addf %7, %9 : vector<128x4xf32>
    %cst_6 = arith.constant 0.000000e+00 : f32
    %11 = vector.broadcast %cst_6 : f32 to vector<128x4xf32>
    %12 = arith.maximumf %10, %11 : vector<128x4xf32>
    %cst_7 = arith.constant dense<0x7F800000> : vector<128xf32>
    %13 = vector.multi_reduction <minimumf>, %12, %cst_7 [1] : vector<128x4xf32> to vector<128xf32>
    %14 = vector.shape_cast %13 : vector<128xf32> to vector<128x1xf32>
    %cst_8 = arith.constant 4.000000e+00 : f32
    %15 = vector.broadcast %cst_8 : f32 to vector<128x1xf32>
    %16 = arith.mulf %15, %14 : vector<128x1xf32>
    %17 = vector.broadcast %16 : vector<128x1xf32> to vector<128x4xf32>
    %18 = arith.cmpf ogt, %12, %17 : vector<128x4xf32>
    %cst_9 = arith.constant 1.000000e-16 : f32
    %19 = vector.broadcast %cst_9 : f32 to vector<128x4xf32>
    %20 = arith.addf %12, %19 : vector<128x4xf32>
    %21 = math.rsqrt %20 : vector<128x4xf32>
    %cst_10 = arith.constant 0.000000e+00 : f32
    %22 = vector.broadcast %cst_10 : f32 to vector<128x4xf32>
    %23 = arith.select %18, %22, %21 : vector<128x4xi1>, vector<128x4xf32>
    %cst_11 = arith.constant dense<0.000000e+00> : vector<128xf32>
    %24 = vector.multi_reduction <add>, %23, %cst_11 [1] : vector<128x4xf32> to vector<128xf32>
    %25 = vector.shape_cast %24 : vector<128xf32> to vector<128x1xf32>
    %26 = vector.broadcast %25 : vector<128x1xf32> to vector<128x4xf32>
    %27 = arith.divf %23, %26 : vector<128x4xf32>
    %c0_12 = arith.constant 0 : index
    %c0_13 = arith.constant 0 : index
    %28 = vector.load %arg2[%c0_12, %c0_13] : memref<128x32xf32, #tpu.memory_space<vmem>>, vector<128x32xf32>
    %c0_14 = arith.constant 0 : index
    %c0_15 = arith.constant 0 : index
    %29 = vector.load %arg6[%c0_14, %c0_15] : memref<32x128xf32, #tpu.memory_space<vmem>>, vector<32x128xf32>
    %cst_16 = arith.constant dense<0.000000e+00> : vector<128x128xf32>
    %30 = tpu.matmul %28, %29, %cst_16 {dimension_numbers = #tpu.dot_dimension_numbers<[1], [0], [0], [1], [0, 0, 1, 1], [], []>} : vector<128x32xf32>, vector<32x128xf32>, vector<128x128xf32> -> vector<128x128xf32>
    %c0_17 = arith.constant 0 : index
    %c0_18 = arith.constant 0 : index
    %31 = vector.load %arg7[%c0_17, %c0_18] : memref<1x128xf32, #tpu.memory_space<vmem>>, vector<1x128xf32>
    %32 = vector.broadcast %31 : vector<1x128xf32> to vector<128x128xf32>
    %33 = arith.addf %30, %32 : vector<128x128xf32>
    %cst_19 = arith.constant 0.000000e+00 : f32
    %34 = vector.broadcast %cst_19 : f32 to vector<128x128xf32>
    %35 = arith.maximumf %33, %34 : vector<128x128xf32>
    %c0_20 = arith.constant 0 : index
    %c0_21 = arith.constant 0 : index
    %36 = vector.load %arg5[%c0_20, %c0_21] : memref<4x128xf32, #tpu.memory_space<vmem>>, vector<4x128xf32>
    %cst_22 = arith.constant dense<0.000000e+00> : vector<128x128xf32>
    %37 = tpu.matmul %27, %36, %cst_22 {dimension_numbers = #tpu.dot_dimension_numbers<[1], [0], [0], [1], [0, 0, 1, 1], [], []>} : vector<128x4xf32>, vector<4x128xf32>, vector<128x128xf32> -> vector<128x128xf32>
    %38 = arith.mulf %35, %37 : vector<128x128xf32>
    %c0_23 = arith.constant 0 : index
    %c0_24 = arith.constant 0 : index
    %39 = vector.load %arg8[%c0_23, %c0_24] : memref<128x4xf32, #tpu.memory_space<vmem>>, vector<128x4xf32>
    %cst_25 = arith.constant dense<0.000000e+00> : vector<128x4xf32>
    %40 = tpu.matmul %38, %39, %cst_25 {dimension_numbers = #tpu.dot_dimension_numbers<[1], [0], [0], [1], [0, 0, 1, 1], [], []>} : vector<128x128xf32>, vector<128x4xf32>, vector<128x4xf32> -> vector<128x4xf32>
    %c0_26 = arith.constant 0 : index
    %c0_27 = arith.constant 0 : index
    %41 = vector.load %arg9[%c0_26, %c0_27] : memref<4x4xf32, #tpu.memory_space<vmem>>, vector<4x4xf32>
    %cst_28 = arith.constant dense<0.000000e+00> : vector<128x4xf32>
    %42 = tpu.matmul %27, %41, %cst_28 {dimension_numbers = #tpu.dot_dimension_numbers<[1], [0], [0], [1], [0, 0, 1, 1], [], []>} : vector<128x4xf32>, vector<4x4xf32>, vector<128x4xf32> -> vector<128x4xf32>
    %43 = arith.addf %40, %42 : vector<128x4xf32>
    %44 = vector.shape_cast %43 : vector<128x4xf32> to vector<4x128xf32>
    %c0_29 = arith.constant 0 : index
    %c0_30 = arith.constant 0 : index
    %45 = vector.load %arg10[%c0_29, %c0_30] : memref<4x128xf32, #tpu.memory_space<vmem>>, vector<4x128xf32>
    tpu.vector_store %arg10[%c0_29, %c0_30], %44 {strides = array<i32>} : memref<4x128xf32, #tpu.memory_space<vmem>>, vector<4x128xf32>,
    return
  }
  func.func @transform_0(%arg0: i32) -> (i32, i32) {
    %c0_i32 = arith.constant 0 : i32
    %c0_i32_0 = arith.constant 0 : i32
    return %arg0, %c0_i32 : i32, i32
  }
  func.func @transform_1(%arg0: i32) -> (i32, i32) {
    %c0_i32 = arith.constant 0 : i32
    %c0_i32_0 = arith.constant 0 : i32
    return %arg0, %c0_i32 : i32, i32
  }
  func.func @transform_2(%arg0: i32) -> (i32, i32) {
    %c0_i32 = arith.constant 0 : i32
    %c0_i32_0 = arith.constant 0 : i32
    %c0_i32_1 = arith.constant 0 : i32
    return %c0_i32, %c0_i32_0 : i32, i32
  }
  func.func @transform_3(%arg0: i32) -> (i32, i32) {
    %c0_i32 = arith.constant 0 : i32
    %c0_i32_0 = arith.constant 0 : i32
    %c0_i32_1 = arith.constant 0 : i32
    return %c0_i32, %c0_i32_0 : i32, i32
  }
  func.func @transform_4(%arg0: i32) -> (i32, i32) {
    %c0_i32 = arith.constant 0 : i32
    %c0_i32_0 = arith.constant 0 : i32
    %c0_i32_1 = arith.constant 0 : i32
    return %c0_i32, %c0_i32_0 : i32, i32
  }
  func.func @transform_5(%arg0: i32) -> (i32, i32) {
    %c0_i32 = arith.constant 0 : i32
    %c0_i32_0 = arith.constant 0 : i32
    %c0_i32_1 = arith.constant 0 : i32
    return %c0_i32, %c0_i32_0 : i32, i32
  }
  func.func @transform_6(%arg0: i32) -> (i32, i32) {
    %c0_i32 = arith.constant 0 : i32
    %c0_i32_0 = arith.constant 0 : i32
    %c0_i32_1 = arith.constant 0 : i32
    return %c0_i32, %c0_i32_0 : i32, i32
  }
  func.func @transform_7(%arg0: i32) -> (i32, i32) {
    %c0_i32 = arith.constant 0 : i32
    %c0_i32_0 = arith.constant 0 : i32
    %c0_i32_1 = arith.constant 0 : i32
    return %c0_i32, %c0_i32_0 : i32, i32
  }
  func.func @transform_8(%arg0: i32) -> (i32, i32) {
    %c0_i32 = arith.constant 0 : i32
    %c0_i32_0 = arith.constant 0 : i32
    %c0_i32_1 = arith.constant 0 : i32
    return %c0_i32, %c0_i32_0 : i32, i32
  }
  func.func @transform_9(%arg0: i32) -> (i32, i32) {
    %c0_i32 = arith.constant 0 : i32
    %c0_i32_0 = arith.constant 0 : i32
    return %arg0, %c0_i32 : i32, i32
  }
}

module attributes {stable_mosaic.version = 11 : i64} {
  func.func @mega_nerf_kernel(%arg0: i32, %arg1: memref<128x3xf32, #tpu.memory_space<vmem>>, %arg2: memref<128x32xf32, #tpu.memory_space<vmem>>, %arg3: memref<3x4xf32, #tpu.memory_space<vmem>>, %arg4: memref<1x4xf32, #tpu.memory_space<vmem>>, %arg5: memref<4x128xf32, #tpu.memory_space<vmem>>, %arg6: memref<32x128xf32, #tpu.memory_space<vmem>>, %arg7: memref<1x128xf32, #tpu.memory_space<vmem>>, %arg8: memref<128x4xf32, #tpu.memory_space<vmem>>, %arg9: memref<4x4xf32, #tpu.memory_space<vmem>>, %arg10: memref<128x4xf32, #tpu.memory_space<vmem>>) attributes {dimension_semantics = [#tpu.dimension_semantics<parallel>], iteration_bounds = array<i64: 1>, scalar_prefetch = 0 : i64, scratch_operands = 0 : i64, tpu.core_type = #tpu.core_type<tc>, window_params = [{transform_indices = @transform_0, window_bounds = array<i64: 128, 3>}, {transform_indices = @transform_1, window_bounds = array<i64: 128, 32>}, {pipeline_mode = #tpu.pipeline_mode<synchronous>, transform_indices = @transform_2, window_bounds = array<i64: 3, 4>}, {pipeline_mode = #tpu.pipeline_mode<synchronous>, transform_indices = @transform_3, window_bounds = array<i64: 1, 4>}, {pipeline_mode = #tpu.pipeline_mode<synchronous>, transform_indices = @transform_4, window_bounds = array<i64: 4, 128>}, {pipeline_mode = #tpu.pipeline_mode<synchronous>, transform_indices = @transform_5, window_bounds = array<i64: 32, 128>}, {pipeline_mode = #tpu.pipeline_mode<synchronous>, transform_indices = @transform_6, window_bounds = array<i64: 1, 128>}, {pipeline_mode = #tpu.pipeline_mode<synchronous>, transform_indices = @transform_7, window_bounds = array<i64: 128, 4>}, {pipeline_mode = #tpu.pipeline_mode<synchronous>, transform_indices = @transform_8, window_bounds = array<i64: 4, 4>}, {transform_indices = @transform_9, window_bounds = array<i64: 128, 4>}]} {
    %c0 = arith.constant 0 : index
    %c0_0 = arith.constant 0 : index
    %0 = vector.load %arg1[%c0, %c0_0] : memref<128x3xf32, #tpu.memory_space<vmem>>, vector<128x3xf32>
    %1 = arith.mulf %0, %0 : vector<128x3xf32>
    %cst = arith.constant dense<0.000000e+00> : vector<128xf32>
    %2 = vector.multi_reduction <add>, %1, %cst [1] : vector<128x3xf32> to vector<128xf32>
    %3 = vector.shape_cast %2 : vector<128xf32> to vector<128x1xf32>
    %c0_1 = arith.constant 0 : index
    %c0_2 = arith.constant 0 : index
    %4 = vector.load %arg3[%c0_1, %c0_2] : memref<3x4xf32, #tpu.memory_space<vmem>>, vector<3x4xf32>
    %cst_3 = arith.constant dense<0.000000e+00> : vector<128x4xf32>
    %5 = tpu.matmul %0, %4, %cst_3 {dimension_numbers = #tpu.dot_dimension_numbers<[1], [0], [0], [1], [0, 0, 1, 1], [], []>} : vector<128x3xf32>, vector<3x4xf32>, vector<128x4xf32> -> vector<128x4xf32>
    %6 = vector.broadcast %3 : vector<128x1xf32> to vector<128x4xf32>
    %7 = arith.addf %6, %5 : vector<128x4xf32>
    %c0_4 = arith.constant 0 : index
    %c0_5 = arith.constant 0 : index
    %8 = vector.load %arg4[%c0_4, %c0_5] : memref<1x4xf32, #tpu.memory_space<vmem>>, vector<1x4xf32>
    %9 = vector.broadcast %8 : vector<1x4xf32> to vector<128x4xf32>
    %10 = arith.addf %7, %9 : vector<128x4xf32>
    %cst_6 = arith.constant 0.000000e+00 : f32
    %11 = vector.broadcast %cst_6 : f32 to vector<128x4xf32>
    %12 = arith.maximumf %10, %11 : vector<128x4xf32>
    %cst_7 = arith.constant dense<0x7F800000> : vector<128xf32>
    %13 = vector.multi_reduction <minimumf>, %12, %cst_7 [1] : vector<128x4xf32> to vector<128xf32>
    %14 = vector.shape_cast %13 : vector<128xf32> to vector<128x1xf32>
    %cst_8 = arith.constant 4.000000e+00 : f32
    %15 = vector.broadcast %cst_8 : f32 to vector<128x1xf32>
    %16 = arith.mulf %15, %14 : vector<128x1xf32>
    %17 = vector.broadcast %16 : vector<128x1xf32> to vector<128x4xf32>
    %18 = arith.cmpf ogt, %12, %17 : vector<128x4xf32>
    %cst_9 = arith.constant 1.000000e-16 : f32
    %19 = vector.broadcast %cst_9 : f32 to vector<128x4xf32>
    %20 = arith.addf %12, %19 : vector<128x4xf32>
    %21 = math.rsqrt %20 : vector<128x4xf32>
    %cst_10 = arith.constant 0.000000e+00 : f32
    %22 = vector.broadcast %cst_10 : f32 to vector<128x4xf32>
    %23 = arith.select %18, %22, %21 : vector<128x4xi1>, vector<128x4xf32>
    %cst_11 = arith.constant dense<0.000000e+00> : vector<128xf32>
    %24 = vector.multi_reduction <add>, %23, %cst_11 [1] : vector<128x4xf32> to vector<128xf32>
    %25 = vector.shape_cast %24 : vector<128xf32> to vector<128x1xf32>
    %26 = vector.broadcast %25 : vector<128x1xf32> to vector<128x4xf32>
    %27 = arith.divf %23, %26 : vector<128x4xf32>
    %c0_12 = arith.constant 0 : index
    %c0_13 = arith.constant 0 : index
    %28 = vector.load %arg2[%c0_12, %c0_13] : memref<128x32xf32, #tpu.memory_space<vmem>>, vector<128x32xf32>
    %c0_14 = arith.constant 0 : index
    %c0_15 = arith.constant 0 : index
    %29 = vector.load %arg6[%c0_14, %c0_15] : memref<32x128xf32, #tpu.memory_space<vmem>>, vector<32x128xf32>
    %cst_16 = arith.constant dense<0.000000e+00> : vector<128x128xf32>
    %30 = tpu.matmul %28, %29, %cst_16 {dimension_numbers = #tpu.dot_dimension_numbers<[1], [0], [0], [1], [0, 0, 1, 1], [], []>} : vector<128x32xf32>, vector<32x128xf32>, vector<128x128xf32> -> vector<128x128xf32>
    %c0_17 = arith.constant 0 : index
    %c0_18 = arith.constant 0 : index
    %31 = vector.load %arg7[%c0_17, %c0_18] : memref<1x128xf32, #tpu.memory_space<vmem>>, vector<1x128xf32>
    %32 = vector.broadcast %31 : vector<1x128xf32> to vector<128x128xf32>
    %33 = arith.addf %30, %32 : vector<128x128xf32>
    %cst_19 = arith.constant 0.000000e+00 : f32
    %34 = vector.broadcast %cst_19 : f32 to vector<128x128xf32>
    %35 = arith.maximumf %33, %34 : vector<128x128xf32>
    %c0_20 = arith.constant 0 : index
    %c0_21 = arith.constant 0 : index
    %36 = vector.load %arg5[%c0_20, %c0_21] : memref<4x128xf32, #tpu.memory_space<vmem>>, vector<4x128xf32>
    %cst_22 = arith.constant dense<0.000000e+00> : vector<128x128xf32>
    %37 = tpu.matmul %27, %36, %cst_22 {dimension_numbers = #tpu.dot_dimension_numbers<[1], [0], [0], [1], [0, 0, 1, 1], [], []>} : vector<128x4xf32>, vector<4x128xf32>, vector<128x128xf32> -> vector<128x128xf32>
    %38 = arith.mulf %35, %37 : vector<128x128xf32>
    %c0_23 = arith.constant 0 : index
    %c0_24 = arith.constant 0 : index
    %39 = vector.load %arg8[%c0_23, %c0_24] : memref<128x4xf32, #tpu.memory_space<vmem>>, vector<128x4xf32>
    %cst_25 = arith.constant dense<0.000000e+00> : vector<128x4xf32>
    %40 = tpu.matmul %38, %39, %cst_25 {dimension_numbers = #tpu.dot_dimension_numbers<[1], [0], [0], [1], [0, 0, 1, 1], [], []>} : vector<128x128xf32>, vector<128x4xf32>, vector<128x4xf32> -> vector<128x4xf32>
    %c0_26 = arith.constant 0 : index
    %c0_27 = arith.constant 0 : index
    %41 = vector.load %arg9[%c0_26, %c0_27] : memref<4x4xf32, #tpu.memory_space<vmem>>, vector<4x4xf32>
    %cst_28 = arith.constant dense<0.000000e+00> : vector<128x4xf32>
    %42 = tpu.matmul %27, %41, %cst_28 {dimension_numbers = #tpu.dot_dimension_numbers<[1], [0], [0], [1], [0, 0, 1, 1], [], []>} : vector<128x4xf32>, vector<4x4xf32>, vector<128x4xf32> -> vector<128x4xf32>
    %43 = arith.addf %40, %42 : vector<128x4xf32>
    %c0_29 = arith.constant 0 : index
    %c0_30 = arith.constant 0 : index
    %44 = vector.load %arg10[%c0_29, %c0_30] : memref<128x4xf32, #tpu.memory_space<vmem>>, vector<128x4xf32>
    tpu.vector_store %arg10[%c0_29, %c0_30], %43 {strides = array<i32>} : memref<128x4xf32, #tpu.memory_space<vmem>>, vector<128x4xf32>,
    return
  }
  func.func @transform_0(%arg0: i32) -> (i32, i32) {
    %c0_i32 = arith.constant 0 : i32
    %c0_i32_0 = arith.constant 0 : i32
    return %arg0, %c0_i32 : i32, i32
  }
  func.func @transform_1(%arg0: i32) -> (i32, i32) {
    %c0_i32 = arith.constant 0 : i32
    %c0_i32_0 = arith.constant 0 : i32
    return %arg0, %c0_i32 : i32, i32
  }
  func.func @transform_2(%arg0: i32) -> (i32, i32) {
    %c0_i32 = arith.constant 0 : i32
    %c0_i32_0 = arith.constant 0 : i32
    %c0_i32_1 = arith.constant 0 : i32
    return %c0_i32, %c0_i32_0 : i32, i32
  }
  func.func @transform_3(%arg0: i32) -> (i32, i32) {
    %c0_i32 = arith.constant 0 : i32
    %c0_i32_0 = arith.constant 0 : i32
    %c0_i32_1 = arith.constant 0 : i32
    return %c0_i32, %c0_i32_0 : i32, i32
  }
  func.func @transform_4(%arg0: i32) -> (i32, i32) {
    %c0_i32 = arith.constant 0 : i32
    %c0_i32_0 = arith.constant 0 : i32
    %c0_i32_1 = arith.constant 0 : i32
    return %c0_i32, %c0_i32_0 : i32, i32
  }
  func.func @transform_5(%arg0: i32) -> (i32, i32) {
    %c0_i32 = arith.constant 0 : i32
    %c0_i32_0 = arith.constant 0 : i32
    %c0_i32_1 = arith.constant 0 : i32
    return %c0_i32, %c0_i32_0 : i32, i32
  }
  func.func @transform_6(%arg0: i32) -> (i32, i32) {
    %c0_i32 = arith.constant 0 : i32
    %c0_i32_0 = arith.constant 0 : i32
    %c0_i32_1 = arith.constant 0 : i32
    return %c0_i32, %c0_i32_0 : i32, i32
  }
  func.func @transform_7(%arg0: i32) -> (i32, i32) {
    %c0_i32 = arith.constant 0 : i32
    %c0_i32_0 = arith.constant 0 : i32
    %c0_i32_1 = arith.constant 0 : i32
    return %c0_i32, %c0_i32_0 : i32, i32
  }
  func.func @transform_8(%arg0: i32) -> (i32, i32) {
    %c0_i32 = arith.constant 0 : i32
    %c0_i32_0 = arith.constant 0 : i32
    %c0_i32_1 = arith.constant 0 : i32
    return %c0_i32, %c0_i32_0 : i32, i32
  }
  func.func @transform_9(%arg0: i32) -> (i32, i32) {
    %c0_i32 = arith.constant 0 : i32
    %c0_i32_0 = arith.constant 0 : i32
    return %arg0, %c0_i32 : i32, i32
  }
}

</mosaic_0001>

<llo_original>
// kernel: tpu_custom_call.1
$region0: #{tpu_custom_call.1}
  #allocation0 [shape = 'u32[]', space=smem, size = 0x4, offset = 0x4, fixed_abs, tag = 'smem constant byte address 0x4 - core index']
  #allocation1 [shape = 'u32[144,128]{1,0:T(1,128)}', space=vmem, size = 0x12000, scoped, tag = 'internal scratch']
  %s0 = inlined_call_operand.vmem [shape: f32[128,3], index: 0, kind: input, shape index: {}]
  %s1 = inlined_call_operand.vmem [shape: f32[128,32], index: 1, kind: input, shape index: {}]
  %s2 = inlined_call_operand.vmem [shape: f32[3,4], index: 2, kind: input, shape index: {}]
  %s3 = inlined_call_operand.vmem [shape: f32[1,4], index: 3, kind: input, shape index: {}]
  %s4 = inlined_call_operand.vmem [shape: f32[4,128], index: 4, kind: input, shape index: {}]
  %s5 = inlined_call_operand.vmem [shape: f32[32,128], index: 5, kind: input, shape index: {}]
  %s6 = inlined_call_operand.vmem [shape: f32[1,128], index: 6, kind: input, shape index: {}]
  %s7 = inlined_call_operand.vmem [shape: f32[128,4], index: 7, kind: input, shape index: {}]
  %s8 = inlined_call_operand.vmem [shape: f32[4,4], index: 8, kind: input, shape index: {}]
  %s9 = inlined_call_operand.vmem [shape: f32[128,4], index: 9, kind: output, shape index: {}]
  %s10 = sld [smem:[#allocation0]]
  $region46: #{tpu_custom_call.1} parent=0
    _
  %s12 = ssub.s32 1, %s10
  %s13 = scalar_select 0, %s12, %s10
  // Predicated region
  $region2: #{tpu_custom_call.1} parent=0 // pred_check
    _
  $region3: #{tpu_custom_call.1} parent=0 // pred_check_branch
    %15 = sbr.rel (0) target = $region5
  $region4: #{tpu_custom_call.1} parent=0 // pred_region
    _
  $region5: #{tpu_custom_call.1} parent=0 // pred_fallthru
    _
  // Predicated region
  $region6: #{tpu_custom_call.1} parent=0 // pred_check
    _
  $region7: #{tpu_custom_call.1} parent=0 // pred_check_branch
    %17 = sbr.rel (0) target = $region9
  $region8: #{tpu_custom_call.1} parent=0 // pred_region
    _
  $region9: #{tpu_custom_call.1} parent=0 // pred_fallthru
    _
  // Predicated region
  $region10: #{tpu_custom_call.1} parent=0 // pred_check
    _
  $region11: #{tpu_custom_call.1} parent=0 // pred_check_branch
    %19 = sbr.rel (0) target = $region13
  $region12: #{tpu_custom_call.1} parent=0 // pred_region
    _
  $region13: #{tpu_custom_call.1} parent=0 // pred_fallthru
    _
  // Predicated region
  $region14: #{tpu_custom_call.1} parent=0 // pred_check
    _
  $region15: #{tpu_custom_call.1} parent=0 // pred_check_branch
    %21 = sbr.rel (0) target = $region17
  $region16: #{tpu_custom_call.1} parent=0 // pred_region
    _
  $region17: #{tpu_custom_call.1} parent=0 // pred_fallthru
    _
  // Predicated region
  $region18: #{tpu_custom_call.1} parent=0 // pred_check
    _
  $region19: #{tpu_custom_call.1} parent=0 // pred_check_branch
    %23 = sbr.rel (0) target = $region21
  $region20: #{tpu_custom_call.1} parent=0 // pred_region
    _
  $region21: #{tpu_custom_call.1} parent=0 // pred_fallthru
    _
  // Predicated region
  $region22: #{tpu_custom_call.1} parent=0 // pred_check
    _
  $region23: #{tpu_custom_call.1} parent=0 // pred_check_branch
    %25 = sbr.rel (0) target = $region25
  $region24: #{tpu_custom_call.1} parent=0 // pred_region
    _
  $region25: #{tpu_custom_call.1} parent=0 // pred_fallthru
    _
  // Predicated region
  $region26: #{tpu_custom_call.1} parent=0 // pred_check
    _
  $region27: #{tpu_custom_call.1} parent=0 // pred_check_branch
    %27 = sbr.rel (0) target = $region29
  $region28: #{tpu_custom_call.1} parent=0 // pred_region
    _
  $region29: #{tpu_custom_call.1} parent=0 // pred_fallthru
    _
  // Predicated region
  $region30: #{tpu_custom_call.1} parent=0 // pred_check
    _
  $region31: #{tpu_custom_call.1} parent=0 // pred_check_branch
    %29 = sbr.rel (0) target = $region33
  $region32: #{tpu_custom_call.1} parent=0 // pred_region
    _
  $region33: #{tpu_custom_call.1} parent=0 // pred_fallthru
    _
  // Predicated region
  $region34: #{tpu_custom_call.1} parent=0 // pred_check
    _
  $region35: #{tpu_custom_call.1} parent=0 // pred_check_branch
    %31 = sbr.rel (0) target = $region37
  $region36: #{tpu_custom_call.1} parent=0 // pred_region
    _
  $region37: #{tpu_custom_call.1} parent=0 // pred_fallthru
    _
  %v32 = vld [vmem:[%s0] sm:$0xff]
  %v33 = vld [vmem:[%s0 + $0x8] sm:$0xff]
  %v34 = vld [vmem:[%s0 + $0x10] sm:$0xff]
  %v35 = vld [vmem:[%s0 + $0x18] sm:$0xff]
  %v36 = vld [vmem:[%s0 + $0x20] sm:$0xff]
  %v37 = vld [vmem:[%s0 + $0x28] sm:$0xff]
  %v38 = vld [vmem:[%s0 + $0x30] sm:$0xff]
  %v39 = vld [vmem:[%s0 + $0x38] sm:$0xff]
  %v40 = vld [vmem:[%s0 + $0x40] sm:$0xff]
  %v41 = vld [vmem:[%s0 + $0x48] sm:$0xff]
  %v42 = vld [vmem:[%s0 + $0x50] sm:$0xff]
  %v43 = vld [vmem:[%s0 + $0x58] sm:$0xff]
  %v44 = vld [vmem:[%s0 + $0x60] sm:$0xff]
  %v45 = vld [vmem:[%s0 + $0x68] sm:$0xff]
  %v46 = vld [vmem:[%s0 + $0x70] sm:$0xff]
  %v47 = vld [vmem:[%s0 + $0x78] sm:$0xff]
  %v48 = vmul.f32 %v32, %v32
  %v49 = vmul.f32 %v33, %v33
  %v50 = vmul.f32 %v34, %v34
  %v51 = vmul.f32 %v35, %v35
  %v52 = vmul.f32 %v36, %v36
  %v53 = vmul.f32 %v37, %v37
  %v54 = vmul.f32 %v38, %v38
  %v55 = vmul.f32 %v39, %v39
  %v56 = vmul.f32 %v40, %v40
  %v57 = vmul.f32 %v41, %v41
  %v58 = vmul.f32 %v42, %v42
  %v59 = vmul.f32 %v43, %v43
  %v60 = vmul.f32 %v44, %v44
  %v61 = vmul.f32 %v45, %v45
  %v62 = vmul.f32 %v46, %v46
  %v63 = vmul.f32 %v47, %v47
  %vm64 = vcmask 23552
  %v65 = vsel %vm64, %v48, 0.0
  %66 = vadd.xlane.f32.xlu0 %v65
  %v67 = vpop.xlane.xlu0 %66
  %v68 = vsel %vm64, %v49, 0.0
  %69 = vadd.xlane.f32.xlu0 %v68
  %v70 = vpop.xlane.xlu0 %69
  %v71 = vsel %vm64, %v50, 0.0
  %72 = vadd.xlane.f32.xlu0 %v71
  %v73 = vpop.xlane.xlu0 %72
  %v74 = vsel %vm64, %v51, 0.0
  %75 = vadd.xlane.f32.xlu0 %v74
  %v76 = vpop.xlane.xlu0 %75
  %v77 = vsel %vm64, %v52, 0.0
  %78 = vadd.xlane.f32.xlu0 %v77
  %v79 = vpop.xlane.xlu0 %78
  %v80 = vsel %vm64, %v53, 0.0
  %81 = vadd.xlane.f32.xlu0 %v80
  %v82 = vpop.xlane.xlu0 %81
  %v83 = vsel %vm64, %v54, 0.0
  %84 = vadd.xlane.f32.xlu0 %v83
  %v85 = vpop.xlane.xlu0 %84
  %v86 = vsel %vm64, %v55, 0.0
  %87 = vadd.xlane.f32.xlu0 %v86
  %v88 = vpop.xlane.xlu0 %87
  %v89 = vsel %vm64, %v56, 0.0
  %90 = vadd.xlane.f32.xlu0 %v89
  %v91 = vpop.xlane.xlu0 %90
  %v92 = vsel %vm64, %v57, 0.0
  %93 = vadd.xlane.f32.xlu0 %v92
  %v94 = vpop.xlane.xlu0 %93
  %v95 = vsel %vm64, %v58, 0.0
  %96 = vadd.xlane.f32.xlu0 %v95
  %v97 = vpop.xlane.xlu0 %96
  %v98 = vsel %vm64, %v59, 0.0
  %99 = vadd.xlane.f32.xlu0 %v98
  %v100 = vpop.xlane.xlu0 %99
  %v101 = vsel %vm64, %v60, 0.0
  %102 = vadd.xlane.f32.xlu0 %v101
  %v103 = vpop.xlane.xlu0 %102
  %v104 = vsel %vm64, %v61, 0.0
  %105 = vadd.xlane.f32.xlu0 %v104
  %v106 = vpop.xlane.xlu0 %105
  %v107 = vsel %vm64, %v62, 0.0
  %108 = vadd.xlane.f32.xlu0 %v107
  %v109 = vpop.xlane.xlu0 %108
  %v110 = vsel %vm64, %v63, 0.0
  %111 = vadd.xlane.f32.xlu0 %v110
  %v112 = vpop.xlane.xlu0 %111
  %v113 = vld [vmem:[%s2] sm:$0x7]
  %v115 = vsel %vm64, %v32, 0
  %v118 = vsel %vm64, %v33, 0
  %v121 = vsel %vm64, %v34, 0
  %v124 = vsel %vm64, %v35, 0
  %v127 = vsel %vm64, %v36, 0
  %v130 = vsel %vm64, %v37, 0
  %v133 = vsel %vm64, %v38, 0
  %v136 = vsel %vm64, %v39, 0
  %v139 = vsel %vm64, %v40, 0
  %v142 = vsel %vm64, %v41, 0
  %v145 = vsel %vm64, %v42, 0
  %v148 = vsel %vm64, %v43, 0
  %v151 = vsel %vm64, %v44, 0
  %v154 = vsel %vm64, %v45, 0
  %v157 = vsel %vm64, %v46, 0
  %v160 = vsel %vm64, %v47, 0
  %vm162 = vcmask 1042432
  %v164 = vsel %vm162, %v113, 0
  %166 = vmatprep.subr.mxu0 0.0
  %167 = vmatpush1.msra.mxu0 %v164
  %168 = vmatprep.subr.mxu0 0.0
  %169 = vmatpush1.msra.mxu0 0.0
  %170 = vmatprep.subr.mxu0 0.0
  %171 = vmatpush1.msra.mxu0 0.0
  %172 = vmatprep.subr.mxu0 0.0
  %173 = vmatpush1.msra.mxu0 0.0
  %174 = vmatprep.subr.mxu0 0.0
  %175 = vmatpush1.msra.mxu0 0.0
  %176 = vmatprep.subr.mxu0 0.0
  %177 = vmatpush1.msra.mxu0 0.0
  %178 = vmatprep.subr.mxu0 0.0
  %179 = vmatpush1.msra.mxu0 0.0
  %180 = vmatprep.subr.mxu0 0.0
  %181 = vmatpush1.msra.mxu0 0.0
  %182 = vmatprep.subr.mxu0 0.0
  %183 = vmatpush1.msra.mxu0 0.0
  %184 = vmatprep.subr.mxu0 0.0
  %185 = vmatpush1.msra.mxu0 0.0
  %186 = vmatprep.subr.mxu0 0.0
  %187 = vmatpush1.msra.mxu0 0.0
  %188 = vmatprep.subr.mxu0 0.0
  %189 = vmatpush1.msra.mxu0 0.0
  %190 = vmatprep.subr.mxu0 0.0
  %191 = vmatpush1.msra.mxu0 0.0
  %192 = vmatprep.subr.mxu0 0.0
  %193 = vmatpush1.msra.mxu0 0.0
  %194 = vmatprep.subr.mxu0 0.0
  %195 = vmatpush1.msra.mxu0 0.0
  %196 = vmatprep.subr.mxu0 0.0
  %197 = vmatpush1.msra.mxu0 0.0
  %198 = vmatprep.subr.mxu0 0.0
  %199 = vmatpush1.msra.mxu0 0.0
  %200 = vmatprep.subr.mxu0 0.0
  %201 = vmatpush1.msra.mxu0 0.0
  %202 = vmatprep.subr.mxu0 0.0
  %203 = vmatpush1.msra.mxu0 0.0
  %204 = vmatprep.subr.mxu0 0.0
  %205 = vmatpush1.msra.mxu0 0.0
  %206 = vmatprep.subr.mxu0 0.0
  %207 = vmatpush1.msra.mxu0 0.0
  %208 = vmatprep.subr.mxu0 0.0
  %209 = vmatpush1.msra.mxu0 0.0
  %210 = vmatprep.subr.mxu0 0.0
  %211 = vmatpush1.msra.mxu0 0.0
  %212 = vmatprep.subr.mxu0 0.0
  %213 = vmatpush1.msra.mxu0 0.0
  %214 = vmatprep.subr.mxu0 0.0
  %215 = vmatpush1.msra.mxu0 0.0
  %216 = vmatprep.subr.mxu0 0.0
  %217 = vmatpush1.msra.mxu0 0.0
  %218 = vmatprep.subr.mxu0 0.0
  %219 = vmatpush1.msra.mxu0 0.0
  %220 = vmatprep.subr.mxu0 0.0
  %221 = vmatpush1.msra.mxu0 0.0
  %222 = vmatprep.subr.mxu0 0.0
  %223 = vmatpush1.msra.mxu0 0.0
  %224 = vmatprep.subr.mxu0 0.0
  %225 = vmatpush1.msra.mxu0 0.0
  %226 = vmatprep.subr.mxu0 0.0
  %227 = vmatpush1.msra.mxu0 0.0
  %228 = vmatprep.subr.mxu0 0.0
  %229 = vmatpush1.msra.mxu0 0.0
  %230 = vmatprep.mubr.f32.mxu0 0.0
  %231 = vmatmul.mubr.f32.gmra.mrb[0].mxu0 %v115
  %v232 = vpop.f32.mrb[0].mxu0
  %v233 = vadd.f32 0.0, %v232
  %v234 = vpop.f32.mrb[0].mxu0
  %235 = vmatprep.mubr.f32.mxu0 0.0
  %236 = vmatmul.mubr.f32.gmra.mrb[0].mxu0 %v118
  %v237 = vpop.f32.mrb[0].mxu0
  %v238 = vadd.f32 0.0, %v237
  %v239 = vpop.f32.mrb[0].mxu0
  %240 = vmatprep.mubr.f32.mxu0 0.0
  %241 = vmatmul.mubr.f32.gmra.mrb[0].mxu0 %v121
  %v242 = vpop.f32.mrb[0].mxu0
  %v243 = vadd.f32 0.0, %v242
  %v244 = vpop.f32.mrb[0].mxu0
  %245 = vmatprep.mubr.f32.mxu0 0.0
  %246 = vmatmul.mubr.f32.gmra.mrb[0].mxu0 %v124
  %v247 = vpop.f32.mrb[0].mxu0
  %v248 = vadd.f32 0.0, %v247
  %v249 = vpop.f32.mrb[0].mxu0
  %250 = vmatprep.mubr.f32.mxu0 0.0
  %251 = vmatmul.mubr.f32.gmra.mrb[0].mxu0 %v127
  %v252 = vpop.f32.mrb[0].mxu0
  %v253 = vadd.f32 0.0, %v252
  %v254 = vpop.f32.mrb[0].mxu0
  %255 = vmatprep.mubr.f32.mxu0 0.0
  %256 = vmatmul.mubr.f32.gmra.mrb[0].mxu0 %v130
  %v257 = vpop.f32.mrb[0].mxu0
  %v258 = vadd.f32 0.0, %v257
  %v259 = vpop.f32.mrb[0].mxu0
  %260 = vmatprep.mubr.f32.mxu0 0.0
  %261 = vmatmul.mubr.f32.gmra.mrb[0].mxu0 %v133
  %v262 = vpop.f32.mrb[0].mxu0
  %v263 = vadd.f32 0.0, %v262
  %v264 = vpop.f32.mrb[0].mxu0
  %265 = vmatprep.mubr.f32.mxu0 0.0
  %266 = vmatmul.mubr.f32.gmra.mrb[0].mxu0 %v136
  %v267 = vpop.f32.mrb[0].mxu0
  %v268 = vadd.f32 0.0, %v267
  %v269 = vpop.f32.mrb[0].mxu0
  %270 = vmatprep.mubr.f32.mxu0 0.0
  %271 = vmatmul.mubr.f32.gmra.mrb[0].mxu0 %v139
  %v272 = vpop.f32.mrb[0].mxu0
  %v273 = vadd.f32 0.0, %v272
  %v274 = vpop.f32.mrb[0].mxu0
  %275 = vmatprep.mubr.f32.mxu0 0.0
  %276 = vmatmul.mubr.f32.gmra.mrb[0].mxu0 %v142
  %v277 = vpop.f32.mrb[0].mxu0
  %v278 = vadd.f32 0.0, %v277
  %v279 = vpop.f32.mrb[0].mxu0
  %280 = vmatprep.mubr.f32.mxu0 0.0
  %281 = vmatmul.mubr.f32.gmra.mrb[0].mxu0 %v145
  %v282 = vpop.f32.mrb[0].mxu0
  %v283 = vadd.f32 0.0, %v282
  %v284 = vpop.f32.mrb[0].mxu0
  %285 = vmatprep.mubr.f32.mxu0 0.0
  %286 = vmatmul.mubr.f32.gmra.mrb[0].mxu0 %v148
  %v287 = vpop.f32.mrb[0].mxu0
  %v288 = vadd.f32 0.0, %v287
  %v289 = vpop.f32.mrb[0].mxu0
  %290 = vmatprep.mubr.f32.mxu0 0.0
  %291 = vmatmul.mubr.f32.gmra.mrb[0].mxu0 %v151
  %v292 = vpop.f32.mrb[0].mxu0
  %v293 = vadd.f32 0.0, %v292
  %v294 = vpop.f32.mrb[0].mxu0
  %295 = vmatprep.mubr.f32.mxu0 0.0
  %296 = vmatmul.mubr.f32.gmra.mrb[0].mxu0 %v154
  %v297 = vpop.f32.mrb[0].mxu0
  %v298 = vadd.f32 0.0, %v297
  %v299 = vpop.f32.mrb[0].mxu0
  %300 = vmatprep.mubr.f32.mxu0 0.0
  %301 = vmatmul.mubr.f32.gmra.mrb[0].mxu0 %v157
  %v302 = vpop.f32.mrb[0].mxu0
  %v303 = vadd.f32 0.0, %v302
  %v304 = vpop.f32.mrb[0].mxu0
  %305 = vmatprep.mubr.f32.mxu0 0.0
  %306 = vmatmul.mubr.f32.gmra.mrb[0].mxu0 %v160
  %v307 = vpop.f32.mrb[0].mxu0
  %v308 = vadd.f32 0.0, %v307
  %v309 = vpop.f32.mrb[0].mxu0
  %310 = vdwg.mxu0
  %v311 = vadd.f32 %v67, %v233
  %v312 = vadd.f32 %v70, %v238
  %v313 = vadd.f32 %v73, %v243
  %v314 = vadd.f32 %v76, %v248
  %v315 = vadd.f32 %v79, %v253
  %v316 = vadd.f32 %v82, %v258
  %v317 = vadd.f32 %v85, %v263
  %v318 = vadd.f32 %v88, %v268
  %v319 = vadd.f32 %v91, %v273
  %v320 = vadd.f32 %v94, %v278
  %v321 = vadd.f32 %v97, %v283
  %v322 = vadd.f32 %v100, %v288
  %v323 = vadd.f32 %v103, %v293
  %v324 = vadd.f32 %v106, %v298
  %v325 = vadd.f32 %v109, %v303
  %v326 = vadd.f32 %v112, %v308
  %v327 = vld [vmem:[%s3] sm:$0x1]
  %v329 = vlaneseq
  %v330 = vshrl.u32 %v329, 7
  %v331 = vsub.s32 0, %v330
  %v332 = vrot.slane %v327, %v331
  %v334 = vadd.f32 %v311, %v332
  %v335 = vadd.f32 %v312, %v332
  %v336 = vadd.f32 %v313, %v332
  %v337 = vadd.f32 %v314, %v332
  %v338 = vadd.f32 %v315, %v332
  %v339 = vadd.f32 %v316, %v332
  %v340 = vadd.f32 %v317, %v332
  %v341 = vadd.f32 %v318, %v332
  %v342 = vadd.f32 %v319, %v332
  %v343 = vadd.f32 %v320, %v332
  %v344 = vadd.f32 %v321, %v332
  %v345 = vadd.f32 %v322, %v332
  %v346 = vadd.f32 %v323, %v332
  %v347 = vadd.f32 %v324, %v332
  %v348 = vadd.f32 %v325, %v332
  %v349 = vadd.f32 %v326, %v332
  %v350 = vmax.f32 %v334, 0.0
  %v351 = vmax.f32 %v335, 0.0
  %v352 = vmax.f32 %v336, 0.0
  %v353 = vmax.f32 %v337, 0.0
  %v354 = vmax.f32 %v338, 0.0
  %v355 = vmax.f32 %v339, 0.0
  %v356 = vmax.f32 %v340, 0.0
  %v357 = vmax.f32 %v341, 0.0
  %v358 = vmax.f32 %v342, 0.0
  %v359 = vmax.f32 %v343, 0.0
  %v360 = vmax.f32 %v344, 0.0
  %v361 = vmax.f32 %v345, 0.0
  %v362 = vmax.f32 %v346, 0.0
  %v363 = vmax.f32 %v347, 0.0
  %v364 = vmax.f32 %v348, 0.0
  %v365 = vmax.f32 %v349, 0.0
  %vm366 = vcmask 31744
  %v367 = vsel %vm366, %v350, inf
  %368 = vmin.xlane.f32.xlu0 %v367
  %v369 = vpop.xlane.xlu0 %368
  %v370 = vsel %vm366, %v351, inf
  %371 = vmin.xlane.f32.xlu0 %v370
  %v372 = vpop.xlane.xlu0 %371
  %v373 = vsel %vm366, %v352, inf
  %374 = vmin.xlane.f32.xlu0 %v373
  %v375 = vpop.xlane.xlu0 %374
  %v376 = vsel %vm366, %v353, inf
  %377 = vmin.xlane.f32.xlu0 %v376
  %v378 = vpop.xlane.xlu0 %377
  %v379 = vsel %vm366, %v354, inf
  %380 = vmin.xlane.f32.xlu0 %v379
  %v381 = vpop.xlane.xlu0 %380
  %v382 = vsel %vm366, %v355, inf
  %383 = vmin.xlane.f32.xlu0 %v382
  %v384 = vpop.xlane.xlu0 %383
  %v385 = vsel %vm366, %v356, inf
  %386 = vmin.xlane.f32.xlu0 %v385
  %v387 = vpop.xlane.xlu0 %386
  %v388 = vsel %vm366, %v357, inf
  %389 = vmin.xlane.f32.xlu0 %v388
  %v390 = vpop.xlane.xlu0 %389
  %v391 = vsel %vm366, %v358, inf
  %392 = vmin.xlane.f32.xlu0 %v391
  %v393 = vpop.xlane.xlu0 %392
  %v394 = vsel %vm366, %v359, inf
  %395 = vmin.xlane.f32.xlu0 %v394
  %v396 = vpop.xlane.xlu0 %395
  %v397 = vsel %vm366, %v360, inf
  %398 = vmin.xlane.f32.xlu0 %v397
  %v399 = vpop.xlane.xlu0 %398
  %v400 = vsel %vm366, %v361, inf
  %401 = vmin.xlane.f32.xlu0 %v400
  %v402 = vpop.xlane.xlu0 %401
  %v403 = vsel %vm366, %v362, inf
  %404 = vmin.xlane.f32.xlu0 %v403
  %v405 = vpop.xlane.xlu0 %404
  %v406 = vsel %vm366, %v363, inf
  %407 = vmin.xlane.f32.xlu0 %v406
  %v408 = vpop.xlane.xlu0 %407
  %v409 = vsel %vm366, %v364, inf
  %410 = vmin.xlane.f32.xlu0 %v409
  %v411 = vpop.xlane.xlu0 %410
  %v412 = vsel %vm366, %v365, inf
  %413 = vmin.xlane.f32.xlu0 %v412
  %v414 = vpop.xlane.xlu0 %413
  %v415 = vmul.f32 %v369, 4.0
  %v416 = vmul.f32 %v372, 4.0
  %v417 = vmul.f32 %v375, 4.0
  %v418 = vmul.f32 %v378, 4.0
  %v419 = vmul.f32 %v381, 4.0
  %v420 = vmul.f32 %v384, 4.0
  %v421 = vmul.f32 %v387, 4.0
  %v422 = vmul.f32 %v390, 4.0
  %v423 = vmul.f32 %v393, 4.0
  %v424 = vmul.f32 %v396, 4.0
  %v425 = vmul.f32 %v399, 4.0
  %v426 = vmul.f32 %v402, 4.0
  %v427 = vmul.f32 %v405, 4.0
  %v428 = vmul.f32 %v408, 4.0
  %v429 = vmul.f32 %v411, 4.0
  %v430 = vmul.f32 %v414, 4.0
  %vm431 = vcmp.gt.f32.partialorder %v350, %v415
  %vm432 = vcmp.gt.f32.partialorder %v351, %v416
  %vm433 = vcmp.gt.f32.partialorder %v352, %v417
  %vm434 = vcmp.gt.f32.partialorder %v353, %v418
  %vm435 = vcmp.gt.f32.partialorder %v354, %v419
  %vm436 = vcmp.gt.f32.partialorder %v355, %v420
  %vm437 = vcmp.gt.f32.partialorder %v356, %v421
  %vm438 = vcmp.gt.f32.partialorder %v357, %v422
  %vm439 = vcmp.gt.f32.partialorder %v358, %v423
  %vm440 = vcmp.gt.f32.partialorder %v359, %v424
  %vm441 = vcmp.gt.f32.partialorder %v360, %v425
  %vm442 = vcmp.gt.f32.partialorder %v361, %v426
  %vm443 = vcmp.gt.f32.partialorder %v362, %v427
  %vm444 = vcmp.gt.f32.partialorder %v363, %v428
  %vm445 = vcmp.gt.f32.partialorder %v364, %v429
  %vm446 = vcmp.gt.f32.partialorder %v365, %v430
  %v447 = vadd.f32 %v350, 1e-16
  %v448 = vadd.f32 %v351, 1e-16
  %v449 = vadd.f32 %v352, 1e-16
  %v450 = vadd.f32 %v353, 1e-16
  %v451 = vadd.f32 %v354, 1e-16
  %v452 = vadd.f32 %v355, 1e-16
  %v453 = vadd.f32 %v356, 1e-16
  %v454 = vadd.f32 %v357, 1e-16
  %v455 = vadd.f32 %v358, 1e-16
  %v456 = vadd.f32 %v359, 1e-16
  %v457 = vadd.f32 %v360, 1e-16
  %v458 = vadd.f32 %v361, 1e-16
  %v459 = vadd.f32 %v362, 1e-16
  %v460 = vadd.f32 %v363, 1e-16
  %v461 = vadd.f32 %v364, 1e-16
  %v462 = vadd.f32 %v365, 1e-16
  %v463 = vrsqrt.pop %v447
  %v464 = vrsqrt.pop %v448
  %v465 = vrsqrt.pop %v449
  %v466 = vrsqrt.pop %v450
  %v467 = vrsqrt.pop %v451
  %v468 = vrsqrt.pop %v452
  %v469 = vrsqrt.pop %v453
  %v470 = vrsqrt.pop %v454
  %v471 = vrsqrt.pop %v455
  %v472 = vrsqrt.pop %v456
  %v473 = vrsqrt.pop %v457
  %v474 = vrsqrt.pop %v458
  %v475 = vrsqrt.pop %v459
  %v476 = vrsqrt.pop %v460
  %v477 = vrsqrt.pop %v461
  %v478 = vrsqrt.pop %v462
  %v479 = vsel %vm431, 0.0, %v463
  %v480 = vsel %vm432, 0.0, %v464
  %v481 = vsel %vm433, 0.0, %v465
  %v482 = vsel %vm434, 0.0, %v466
  %v483 = vsel %vm435, 0.0, %v467
  %v484 = vsel %vm436, 0.0, %v468
  %v485 = vsel %vm437, 0.0, %v469
  %v486 = vsel %vm438, 0.0, %v470
  %v487 = vsel %vm439, 0.0, %v471
  %v488 = vsel %vm440, 0.0, %v472
  %v489 = vsel %vm441, 0.0, %v473
  %v490 = vsel %vm442, 0.0, %v474
  %v491 = vsel %vm443, 0.0, %v475
  %v492 = vsel %vm444, 0.0, %v476
  %v493 = vsel %vm445, 0.0, %v477
  %v494 = vsel %vm446, 0.0, %v478
  %v495 = vsel %vm366, %v479, 0.0
  %496 = vadd.xlane.f32.xlu0 %v495
  %v497 = vpop.xlane.xlu0 %496
  %v498 = vsel %vm366, %v480, 0.0
  %499 = vadd.xlane.f32.xlu0 %v498
  %v500 = vpop.xlane.xlu0 %499
  %v501 = vsel %vm366, %v481, 0.0
  %502 = vadd.xlane.f32.xlu0 %v501
  %v503 = vpop.xlane.xlu0 %502
  %v504 = vsel %vm366, %v482, 0.0
  %505 = vadd.xlane.f32.xlu0 %v504
  %v506 = vpop.xlane.xlu0 %505
  %v507 = vsel %vm366, %v483, 0.0
  %508 = vadd.xlane.f32.xlu0 %v507
  %v509 = vpop.xlane.xlu0 %508
  %v510 = vsel %vm366, %v484, 0.0
  %511 = vadd.xlane.f32.xlu0 %v510
  %v512 = vpop.xlane.xlu0 %511
  %v513 = vsel %vm366, %v485, 0.0
  %514 = vadd.xlane.f32.xlu0 %v513
  %v515 = vpop.xlane.xlu0 %514
  %v516 = vsel %vm366, %v486, 0.0
  %517 = vadd.xlane.f32.xlu0 %v516
  %v518 = vpop.xlane.xlu0 %517
  %v519 = vsel %vm366, %v487, 0.0
  %520 = vadd.xlane.f32.xlu0 %v519
  %v521 = vpop.xlane.xlu0 %520
  %v522 = vsel %vm366, %v488, 0.0
  %523 = vadd.xlane.f32.xlu0 %v522
  %v524 = vpop.xlane.xlu0 %523
  %v525 = vsel %vm366, %v489, 0.0
  %526 = vadd.xlane.f32.xlu0 %v525
  %v527 = vpop.xlane.xlu0 %526
  %v528 = vsel %vm366, %v490, 0.0
  %529 = vadd.xlane.f32.xlu0 %v528
  %v530 = vpop.xlane.xlu0 %529
  %v531 = vsel %vm366, %v491, 0.0
  %532 = vadd.xlane.f32.xlu0 %v531
  %v533 = vpop.xlane.xlu0 %532
  %v534 = vsel %vm366, %v492, 0.0
  %535 = vadd.xlane.f32.xlu0 %v534
  %v536 = vpop.xlane.xlu0 %535
  %v537 = vsel %vm366, %v493, 0.0
  %538 = vadd.xlane.f32.xlu0 %v537
  %v539 = vpop.xlane.xlu0 %538
  %v540 = vsel %vm366, %v494, 0.0
  %541 = vadd.xlane.f32.xlu0 %v540
  %v542 = vpop.xlane.xlu0 %541
  %v543 = vrcp.pop %v497
  %v544 = vmul.f32 %v479, %v543
  %v545 = vrcp.pop %v500
  %v546 = vmul.f32 %v480, %v545
  %v547 = vrcp.pop %v503
  %v548 = vmul.f32 %v481, %v547
  %v549 = vrcp.pop %v506
  %v550 = vmul.f32 %v482, %v549
  %v551 = vrcp.pop %v509
  %v552 = vmul.f32 %v483, %v551
  %v553 = vrcp.pop %v512
  %v554 = vmul.f32 %v484, %v553
  %v555 = vrcp.pop %v515
  %v556 = vmul.f32 %v485, %v555
  %v557 = vrcp.pop %v518
  %v558 = vmul.f32 %v486, %v557
  %v559 = vrcp.pop %v521
  %v560 = vmul.f32 %v487, %v559
  %v561 = vrcp.pop %v524
  %v562 = vmul.f32 %v488, %v561
  %v563 = vrcp.pop %v527
  %v564 = vmul.f32 %v489, %v563
  %v565 = vrcp.pop %v530
  %v566 = vmul.f32 %v490, %v565
  %v567 = vrcp.pop %v533
  %v568 = vmul.f32 %v491, %v567
  %v569 = vrcp.pop %v536
  %v570 = vmul.f32 %v492, %v569
  %v571 = vrcp.pop %v539
  %v572 = vmul.f32 %v493, %v571
  %v573 = vrcp.pop %v542
  %v574 = vmul.f32 %v494, %v573
  %v575 = vld [vmem:[%s1] sm:$0xff]
  %v576 = vld [vmem:[%s1 + $0x8] sm:$0xff]
  %v577 = vld [vmem:[%s1 + $0x10] sm:$0xff]
  %v578 = vld [vmem:[%s1 + $0x18] sm:$0xff]
  %v579 = vld [vmem:[%s1 + $0x20] sm:$0xff]
  %v580 = vld [vmem:[%s1 + $0x28] sm:$0xff]
  %v581 = vld [vmem:[%s1 + $0x30] sm:$0xff]
  %v582 = vld [vmem:[%s1 + $0x38] sm:$0xff]
  %v583 = vld [vmem:[%s1 + $0x40] sm:$0xff]
  %v584 = vld [vmem:[%s1 + $0x48] sm:$0xff]
  %v585 = vld [vmem:[%s1 + $0x50] sm:$0xff]
  %v586 = vld [vmem:[%s1 + $0x58] sm:$0xff]
  %v587 = vld [vmem:[%s1 + $0x60] sm:$0xff]
  %v588 = vld [vmem:[%s1 + $0x68] sm:$0xff]
  %v589 = vld [vmem:[%s1 + $0x70] sm:$0xff]
  %v590 = vld [vmem:[%s1 + $0x78] sm:$0xff]
  %v591 = vld [vmem:[%s5] sm:$0xff]
  %v592 = vld [vmem:[%s5 + $0x8] sm:$0xff]
  %v593 = vld [vmem:[%s5 + $0x10] sm:$0xff]
  %v594 = vld [vmem:[%s5 + $0x18] sm:$0xff]
  %v595 = vld [vmem:[%s6] sm:$0x1]
  %v597 = vlaneseq
  %v598 = vshrl.u32 %v597, 7
  %v599 = vsub.s32 0, %v598
  %v600 = vrot.slane %v595, %v599
  %vm602 = vcmask 261120
  %v604 = vsel %vm602, %v575, 0
  %v607 = vsel %vm602, %v576, 0
  %v610 = vsel %vm602, %v577, 0
  %v613 = vsel %vm602, %v578, 0
  %v616 = vsel %vm602, %v579, 0
  %v619 = vsel %vm602, %v580, 0
  %v622 = vsel %vm602, %v581, 0
  %v625 = vsel %vm602, %v582, 0
  %v628 = vsel %vm602, %v583, 0
  %v631 = vsel %vm602, %v584, 0
  %v634 = vsel %vm602, %v585, 0
  %v637 = vsel %vm602, %v586, 0
  %v640 = vsel %vm602, %v587, 0
  %v643 = vsel %vm602, %v588, 0
  %v646 = vsel %vm602, %v589, 0
  %v649 = vsel %vm602, %v590, 0
  %651 = vmatprep.subr.mxu0 0.0
  %652 = vmatpush1.msra.mxu0 %v591
  %653 = vmatprep.subr.mxu0 0.0
  %654 = vmatpush1.msra.mxu0 %v592
  %655 = vmatprep.subr.mxu0 0.0
  %656 = vmatpush1.msra.mxu0 %v593
  %657 = vmatprep.subr.mxu0 0.0
  %658 = vmatpush1.msra.mxu0 %v594
  %659 = vmatprep.subr.mxu0 0.0
  %660 = vmatpush1.msra.mxu0 0.0
  %661 = vmatprep.subr.mxu0 0.0
  %662 = vmatpush1.msra.mxu0 0.0
  %663 = vmatprep.subr.mxu0 0.0
  %664 = vmatpush1.msra.mxu0 0.0
  %665 = vmatprep.subr.mxu0 0.0
  %666 = vmatpush1.msra.mxu0 0.0
  %667 = vmatprep.subr.mxu0 0.0
  %668 = vmatpush1.msra.mxu0 0.0
  %669 = vmatprep.subr.mxu0 0.0
  %670 = vmatpush1.msra.mxu0 0.0
  %671 = vmatprep.subr.mxu0 0.0
  %672 = vmatpush1.msra.mxu0 0.0
  %673 = vmatprep.subr.mxu0 0.0
  %674 = vmatpush1.msra.mxu0 0.0
  %675 = vmatprep.subr.mxu0 0.0
  %676 = vmatpush1.msra.mxu0 0.0
  %677 = vmatprep.subr.mxu0 0.0
  %678 = vmatpush1.msra.mxu0 0.0
  %679 = vmatprep.subr.mxu0 0.0
  %680 = vmatpush1.msra.mxu0 0.0
  %681 = vmatprep.subr.mxu0 0.0
  %682 = vmatpush1.msra.mxu0 0.0
  %683 = vmatprep.subr.mxu0 0.0
  %684 = vmatpush1.msra.mxu0 0.0
  %685 = vmatprep.subr.mxu0 0.0
  %686 = vmatpush1.msra.mxu0 0.0
  %687 = vmatprep.subr.mxu0 0.0
  %688 = vmatpush1.msra.mxu0 0.0
  %689 = vmatprep.subr.mxu0 0.0
  %690 = vmatpush1.msra.mxu0 0.0
  %691 = vmatprep.subr.mxu0 0.0
  %692 = vmatpush1.msra.mxu0 0.0
  %693 = vmatprep.subr.mxu0 0.0
  %694 = vmatpush1.msra.mxu0 0.0
  %695 = vmatprep.subr.mxu0 0.0
  %696 = vmatpush1.msra.mxu0 0.0
  %697 = vmatprep.subr.mxu0 0.0
  %698 = vmatpush1.msra.mxu0 0.0
  %699 = vmatprep.subr.mxu0 0.0
  %700 = vmatpush1.msra.mxu0 0.0
  %701 = vmatprep.subr.mxu0 0.0
  %702 = vmatpush1.msra.mxu0 0.0
  %703 = vmatprep.subr.mxu0 0.0
  %704 = vmatpush1.msra.mxu0 0.0
  %705 = vmatprep.subr.mxu0 0.0
  %706 = vmatpush1.msra.mxu0 0.0
  %707 = vmatprep.subr.mxu0 0.0
  %708 = vmatpush1.msra.mxu0 0.0
  %709 = vmatprep.subr.mxu0 0.0
  %710 = vmatpush1.msra.mxu0 0.0
  %711 = vmatprep.subr.mxu0 0.0
  %712 = vmatpush1.msra.mxu0 0.0
  %713 = vmatprep.subr.mxu0 0.0
  %714 = vmatpush1.msra.mxu0 0.0
  %715 = vmatprep.mubr.f32.mxu0 0.0
  %716 = vmatmul.mubr.f32.gmra.mrb[0].mxu0 %v604
  %v717 = vpop.f32.mrb[0].mxu0
  %v718 = vadd.f32 %v600, %v717
  %v719 = vpop.f32.mrb[0].mxu0
  %720 = vmatprep.mubr.f32.mxu0 0.0
  %721 = vmatmul.mubr.f32.gmra.mrb[0].mxu0 %v607
  %v722 = vpop.f32.mrb[0].mxu0
  %v723 = vadd.f32 %v600, %v722
  %v724 = vpop.f32.mrb[0].mxu0
  %725 = vmatprep.mubr.f32.mxu0 0.0
  %726 = vmatmul.mubr.f32.gmra.mrb[0].mxu0 %v610
  %v727 = vpop.f32.mrb[0].mxu0
  %v728 = vadd.f32 %v600, %v727
  %v729 = vpop.f32.mrb[0].mxu0
  %730 = vmatprep.mubr.f32.mxu0 0.0
  %731 = vmatmul.mubr.f32.gmra.mrb[0].mxu0 %v613
  %v732 = vpop.f32.mrb[0].mxu0
  %v733 = vadd.f32 %v600, %v732
  %v734 = vpop.f32.mrb[0].mxu0
  %735 = vmatprep.mubr.f32.mxu0 0.0
  %736 = vmatmul.mubr.f32.gmra.mrb[0].mxu0 %v616
  %v737 = vpop.f32.mrb[0].mxu0
  %v738 = vadd.f32 %v600, %v737
  %v739 = vpop.f32.mrb[0].mxu0
  %740 = vmatprep.mubr.f32.mxu0 0.0
  %741 = vmatmul.mubr.f32.gmra.mrb[0].mxu0 %v619
  %v742 = vpop.f32.mrb[0].mxu0
  %v743 = vadd.f32 %v600, %v742
  %v744 = vpop.f32.mrb[0].mxu0
  %745 = vmatprep.mubr.f32.mxu0 0.0
  %746 = vmatmul.mubr.f32.gmra.mrb[0].mxu0 %v622
  %v747 = vpop.f32.mrb[0].mxu0
  %v748 = vadd.f32 %v600, %v747
  %v749 = vpop.f32.mrb[0].mxu0
  %750 = vmatprep.mubr.f32.mxu0 0.0
  %751 = vmatmul.mubr.f32.gmra.mrb[0].mxu0 %v625
  %v752 = vpop.f32.mrb[0].mxu0
  %v753 = vadd.f32 %v600, %v752
  %v754 = vpop.f32.mrb[0].mxu0
  %755 = vmatprep.mubr.f32.mxu0 0.0
  %756 = vmatmul.mubr.f32.gmra.mrb[0].mxu0 %v628
  %v757 = vpop.f32.mrb[0].mxu0
  %v758 = vadd.f32 %v600, %v757
  %v759 = vpop.f32.mrb[0].mxu0
  %760 = vmatprep.mubr.f32.mxu0 0.0
  %761 = vmatmul.mubr.f32.gmra.mrb[0].mxu0 %v631
  %v762 = vpop.f32.mrb[0].mxu0
  %v763 = vadd.f32 %v600, %v762
  %v764 = vpop.f32.mrb[0].mxu0
  %765 = vmatprep.mubr.f32.mxu0 0.0
  %766 = vmatmul.mubr.f32.gmra.mrb[0].mxu0 %v634
  %v767 = vpop.f32.mrb[0].mxu0
  %v768 = vadd.f32 %v600, %v767
  %v769 = vpop.f32.mrb[0].mxu0
  %770 = vmatprep.mubr.f32.mxu0 0.0
  %771 = vmatmul.mubr.f32.gmra.mrb[0].mxu0 %v637
  %v772 = vpop.f32.mrb[0].mxu0
  %v773 = vadd.f32 %v600, %v772
  %v774 = vpop.f32.mrb[0].mxu0
  %775 = vmatprep.mubr.f32.mxu0 0.0
  %776 = vmatmul.mubr.f32.gmra.mrb[0].mxu0 %v640
  %v777 = vpop.f32.mrb[0].mxu0
  %v778 = vadd.f32 %v600, %v777
  %v779 = vpop.f32.mrb[0].mxu0
  %780 = vmatprep.mubr.f32.mxu0 0.0
  %781 = vmatmul.mubr.f32.gmra.mrb[0].mxu0 %v643
  %v782 = vpop.f32.mrb[0].mxu0
  %v783 = vadd.f32 %v600, %v782
  %v784 = vpop.f32.mrb[0].mxu0
  %785 = vmatprep.mubr.f32.mxu0 0.0
  %786 = vmatmul.mubr.f32.gmra.mrb[0].mxu0 %v646
  %v787 = vpop.f32.mrb[0].mxu0
  %v788 = vadd.f32 %v600, %v787
  %v789 = vpop.f32.mrb[0].mxu0
  %790 = vmatprep.mubr.f32.mxu0 0.0
  %791 = vmatmul.mubr.f32.gmra.mrb[0].mxu0 %v649
  %v792 = vpop.f32.mrb[0].mxu0
  %v793 = vadd.f32 %v600, %v792
  %v794 = vpop.f32.mrb[0].mxu0
  %795 = vdwg.mxu0
  %v796 = vmax.f32 %v718, 0.0
  %v797 = vmax.f32 %v723, 0.0
  %v798 = vmax.f32 %v728, 0.0
  %v799 = vmax.f32 %v733, 0.0
  %v800 = vmax.f32 %v738, 0.0
  %v801 = vmax.f32 %v743, 0.0
  %v802 = vmax.f32 %v748, 0.0
  %v803 = vmax.f32 %v753, 0.0
  %v804 = vmax.f32 %v758, 0.0
  %v805 = vmax.f32 %v763, 0.0
  %v806 = vmax.f32 %v768, 0.0
  %v807 = vmax.f32 %v773, 0.0
  %v808 = vmax.f32 %v778, 0.0
  %v809 = vmax.f32 %v783, 0.0
  %v810 = vmax.f32 %v788, 0.0
  %v811 = vmax.f32 %v793, 0.0
  %v812 = vld [vmem:[%s4] sm:$0xf]
  %v814 = vsel %vm366, %v544, 0
  %v817 = vsel %vm366, %v546, 0
  %v820 = vsel %vm366, %v548, 0
  %v823 = vsel %vm366, %v550, 0
  %v826 = vsel %vm366, %v552, 0
  %v829 = vsel %vm366, %v554, 0
  %v832 = vsel %vm366, %v556, 0
  %v835 = vsel %vm366, %v558, 0
  %v838 = vsel %vm366, %v560, 0
  %v841 = vsel %vm366, %v562, 0
  %v844 = vsel %vm366, %v564, 0
  %v847 = vsel %vm366, %v566, 0
  %v850 = vsel %vm366, %v568, 0
  %v853 = vsel %vm366, %v570, 0
  %v856 = vsel %vm366, %v572, 0
  %v859 = vsel %vm366, %v574, 0
  %vm861 = vcmask 1043456
  %v863 = vsel %vm861, %v812, 0
  %865 = vmatprep.subr.mxu0 0.0
  %866 = vmatpush1.msra.mxu0 %v863
  %867 = vmatprep.subr.mxu0 0.0
  %868 = vmatpush1.msra.mxu0 0.0
  %869 = vmatprep.subr.mxu0 0.0
  %870 = vmatpush1.msra.mxu0 0.0
  %871 = vmatprep.subr.mxu0 0.0
  %872 = vmatpush1.msra.mxu0 0.0
  %873 = vmatprep.subr.mxu0 0.0
  %874 = vmatpush1.msra.mxu0 0.0
  %875 = vmatprep.subr.mxu0 0.0
  %876 = vmatpush1.msra.mxu0 0.0
  %877 = vmatprep.subr.mxu0 0.0
  %878 = vmatpush1.msra.mxu0 0.0
  %879 = vmatprep.subr.mxu0 0.0
  %880 = vmatpush1.msra.mxu0 0.0
  %881 = vmatprep.subr.mxu0 0.0
  %882 = vmatpush1.msra.mxu0 0.0
  %883 = vmatprep.subr.mxu0 0.0
  %884 = vmatpush1.msra.mxu0 0.0
  %885 = vmatprep.subr.mxu0 0.0
  %886 = vmatpush1.msra.mxu0 0.0
  %887 = vmatprep.subr.mxu0 0.0
  %888 = vmatpush1.msra.mxu0 0.0
  %889 = vmatprep.subr.mxu0 0.0
  %890 = vmatpush1.msra.mxu0 0.0
  %891 = vmatprep.subr.mxu0 0.0
  %892 = vmatpush1.msra.mxu0 0.0
  %893 = vmatprep.subr.mxu0 0.0
  %894 = vmatpush1.msra.mxu0 0.0
  %895 = vmatprep.subr.mxu0 0.0
  %896 = vmatpush1.msra.mxu0 0.0
  %897 = vmatprep.subr.mxu0 0.0
  %898 = vmatpush1.msra.mxu0 0.0
  %899 = vmatprep.subr.mxu0 0.0
  %900 = vmatpush1.msra.mxu0 0.0
  %901 = vmatprep.subr.mxu0 0.0
  %902 = vmatpush1.msra.mxu0 0.0
  %903 = vmatprep.subr.mxu0 0.0
  %904 = vmatpush1.msra.mxu0 0.0
  %905 = vmatprep.subr.mxu0 0.0
  %906 = vmatpush1.msra.mxu0 0.0
  %907 = vmatprep.subr.mxu0 0.0
  %908 = vmatpush1.msra.mxu0 0.0
  %909 = vmatprep.subr.mxu0 0.0
  %910 = vmatpush1.msra.mxu0 0.0
  %911 = vmatprep.subr.mxu0 0.0
  %912 = vmatpush1.msra.mxu0 0.0
  %913 = vmatprep.subr.mxu0 0.0
  %914 = vmatpush1.msra.mxu0 0.0
  %915 = vmatprep.subr.mxu0 0.0
  %916 = vmatpush1.msra.mxu0 0.0
  %917 = vmatprep.subr.mxu0 0.0
  %918 = vmatpush1.msra.mxu0 0.0
  %919 = vmatprep.subr.mxu0 0.0
  %920 = vmatpush1.msra.mxu0 0.0
  %921 = vmatprep.subr.mxu0 0.0
  %922 = vmatpush1.msra.mxu0 0.0
  %923 = vmatprep.subr.mxu0 0.0
  %924 = vmatpush1.msra.mxu0 0.0
  %925 = vmatprep.subr.mxu0 0.0
  %926 = vmatpush1.msra.mxu0 0.0
  %927 = vmatprep.subr.mxu0 0.0
  %928 = vmatpush1.msra.mxu0 0.0
  %929 = vmatprep.mubr.f32.mxu0 0.0
  %930 = vmatmul.mubr.f32.gmra.mrb[0].mxu0 %v814
  %v931 = vpop.f32.mrb[0].mxu0
  %v932 = vadd.f32 0.0, %v931
  %v933 = vpop.f32.mrb[0].mxu0
  %934 = vmatprep.mubr.f32.mxu0 0.0
  %935 = vmatmul.mubr.f32.gmra.mrb[0].mxu0 %v817
  %v936 = vpop.f32.mrb[0].mxu0
  %v937 = vadd.f32 0.0, %v936
  %v938 = vpop.f32.mrb[0].mxu0
  %939 = vmatprep.mubr.f32.mxu0 0.0
  %940 = vmatmul.mubr.f32.gmra.mrb[0].mxu0 %v820
  %v941 = vpop.f32.mrb[0].mxu0
  %v942 = vadd.f32 0.0, %v941
  %v943 = vpop.f32.mrb[0].mxu0
  %944 = vmatprep.mubr.f32.mxu0 0.0
  %945 = vmatmul.mubr.f32.gmra.mrb[0].mxu0 %v823
  %v946 = vpop.f32.mrb[0].mxu0
  %v947 = vadd.f32 0.0, %v946
  %v948 = vpop.f32.mrb[0].mxu0
  %949 = vmatprep.mubr.f32.mxu0 0.0
  %950 = vmatmul.mubr.f32.gmra.mrb[0].mxu0 %v826
  %v951 = vpop.f32.mrb[0].mxu0
  %v952 = vadd.f32 0.0, %v951
  %v953 = vpop.f32.mrb[0].mxu0
  %954 = vmatprep.mubr.f32.mxu0 0.0
  %955 = vmatmul.mubr.f32.gmra.mrb[0].mxu0 %v829
  %v956 = vpop.f32.mrb[0].mxu0
  %v957 = vadd.f32 0.0, %v956
  %v958 = vpop.f32.mrb[0].mxu0
  %959 = vmatprep.mubr.f32.mxu0 0.0
  %960 = vmatmul.mubr.f32.gmra.mrb[0].mxu0 %v832
  %v961 = vpop.f32.mrb[0].mxu0
  %v962 = vadd.f32 0.0, %v961
  %v963 = vpop.f32.mrb[0].mxu0
  %964 = vmatprep.mubr.f32.mxu0 0.0
  %965 = vmatmul.mubr.f32.gmra.mrb[0].mxu0 %v835
  %v966 = vpop.f32.mrb[0].mxu0
  %v967 = vadd.f32 0.0, %v966
  %v968 = vpop.f32.mrb[0].mxu0
  %969 = vmatprep.mubr.f32.mxu0 0.0
  %970 = vmatmul.mubr.f32.gmra.mrb[0].mxu0 %v838
  %v971 = vpop.f32.mrb[0].mxu0
  %v972 = vadd.f32 0.0, %v971
  %v973 = vpop.f32.mrb[0].mxu0
  %974 = vmatprep.mubr.f32.mxu0 0.0
  %975 = vmatmul.mubr.f32.gmra.mrb[0].mxu0 %v841
  %v976 = vpop.f32.mrb[0].mxu0
  %v977 = vadd.f32 0.0, %v976
  %v978 = vpop.f32.mrb[0].mxu0
  %979 = vmatprep.mubr.f32.mxu0 0.0
  %980 = vmatmul.mubr.f32.gmra.mrb[0].mxu0 %v844
  %v981 = vpop.f32.mrb[0].mxu0
  %v982 = vadd.f32 0.0, %v981
  %v983 = vpop.f32.mrb[0].mxu0
  %984 = vmatprep.mubr.f32.mxu0 0.0
  %985 = vmatmul.mubr.f32.gmra.mrb[0].mxu0 %v847
  %v986 = vpop.f32.mrb[0].mxu0
  %v987 = vadd.f32 0.0, %v986
  %v988 = vpop.f32.mrb[0].mxu0
  %989 = vmatprep.mubr.f32.mxu0 0.0
  %990 = vmatmul.mubr.f32.gmra.mrb[0].mxu0 %v850
  %v991 = vpop.f32.mrb[0].mxu0
  %v992 = vadd.f32 0.0, %v991
  %v993 = vpop.f32.mrb[0].mxu0
  %994 = vmatprep.mubr.f32.mxu0 0.0
  %995 = vmatmul.mubr.f32.gmra.mrb[0].mxu0 %v853
  %v996 = vpop.f32.mrb[0].mxu0
  %v997 = vadd.f32 0.0, %v996
  %v998 = vpop.f32.mrb[0].mxu0
  %999 = vmatprep.mubr.f32.mxu0 0.0
  %1000 = vmatmul.mubr.f32.gmra.mrb[0].mxu0 %v856
  %v1001 = vpop.f32.mrb[0].mxu0
  %v1002 = vadd.f32 0.0, %v1001
  %v1003 = vpop.f32.mrb[0].mxu0
  %1004 = vmatprep.mubr.f32.mxu0 0.0
  %1005 = vmatmul.mubr.f32.gmra.mrb[0].mxu0 %v859
  %v1006 = vpop.f32.mrb[0].mxu0
  %v1007 = vadd.f32 0.0, %v1006
  %v1008 = vpop.f32.mrb[0].mxu0
  %1009 = vdwg.mxu0
  %v1010 = vmul.f32 %v796, %v932
  %v1011 = vmul.f32 %v797, %v937
  %v1012 = vmul.f32 %v798, %v942
  %v1013 = vmul.f32 %v799, %v947
  %v1014 = vmul.f32 %v800, %v952
  %v1015 = vmul.f32 %v801, %v957
  %v1016 = vmul.f32 %v802, %v962
  %v1017 = vmul.f32 %v803, %v967
  %v1018 = vmul.f32 %v804, %v972
  %v1019 = vmul.f32 %v805, %v977
  %v1020 = vmul.f32 %v806, %v982
  %v1021 = vmul.f32 %v807, %v987
  %v1022 = vmul.f32 %v808, %v992
  %v1023 = vmul.f32 %v809, %v997
  %v1024 = vmul.f32 %v810, %v1002
  %v1025 = vmul.f32 %v811, %v1007
  %v1026 = vld [vmem:[%s7] sm:$0xff]
  %v1027 = vld [vmem:[%s7 + $0x8] sm:$0xff]
  %v1028 = vld [vmem:[%s7 + $0x10] sm:$0xff]
  %v1029 = vld [vmem:[%s7 + $0x18] sm:$0xff]
  %v1030 = vld [vmem:[%s7 + $0x20] sm:$0xff]
  %v1031 = vld [vmem:[%s7 + $0x28] sm:$0xff]
  %v1032 = vld [vmem:[%s7 + $0x30] sm:$0xff]
  %v1033 = vld [vmem:[%s7 + $0x38] sm:$0xff]
  %v1034 = vld [vmem:[%s7 + $0x40] sm:$0xff]
  %v1035 = vld [vmem:[%s7 + $0x48] sm:$0xff]
  %v1036 = vld [vmem:[%s7 + $0x50] sm:$0xff]
  %v1037 = vld [vmem:[%s7 + $0x58] sm:$0xff]
  %v1038 = vld [vmem:[%s7 + $0x60] sm:$0xff]
  %v1039 = vld [vmem:[%s7 + $0x68] sm:$0xff]
  %v1040 = vld [vmem:[%s7 + $0x70] sm:$0xff]
  %v1041 = vld [vmem:[%s7 + $0x78] sm:$0xff]
  %v1042 = vld [vmem:[%s8] sm:$0xf]
  %v1044 = vsel %vm861, %v1042, 0
  %1046 = vmatprep.subr.mxu0 0.0
  %1047 = vmatpush1.msra.mxu0 %v1044
  %1048 = vmatprep.subr.mxu0 0.0
  %1049 = vmatpush1.msra.mxu0 0.0
  %1050 = vmatprep.subr.mxu0 0.0
  %1051 = vmatpush1.msra.mxu0 0.0
  %1052 = vmatprep.subr.mxu0 0.0
  %1053 = vmatpush1.msra.mxu0 0.0
  %1054 = vmatprep.subr.mxu0 0.0
  %1055 = vmatpush1.msra.mxu0 0.0
  %1056 = vmatprep.subr.mxu0 0.0
  %1057 = vmatpush1.msra.mxu0 0.0
  %1058 = vmatprep.subr.mxu0 0.0
  %1059 = vmatpush1.msra.mxu0 0.0
  %1060 = vmatprep.subr.mxu0 0.0
  %1061 = vmatpush1.msra.mxu0 0.0
  %1062 = vmatprep.subr.mxu0 0.0
  %1063 = vmatpush1.msra.mxu0 0.0
  %1064 = vmatprep.subr.mxu0 0.0
  %1065 = vmatpush1.msra.mxu0 0.0
  %1066 = vmatprep.subr.mxu0 0.0
  %1067 = vmatpush1.msra.mxu0 0.0
  %1068 = vmatprep.subr.mxu0 0.0
  %1069 = vmatpush1.msra.mxu0 0.0
  %1070 = vmatprep.subr.mxu0 0.0
  %1071 = vmatpush1.msra.mxu0 0.0
  %1072 = vmatprep.subr.mxu0 0.0
  %1073 = vmatpush1.msra.mxu0 0.0
  %1074 = vmatprep.subr.mxu0 0.0
  %1075 = vmatpush1.msra.mxu0 0.0
  %1076 = vmatprep.subr.mxu0 0.0
  %1077 = vmatpush1.msra.mxu0 0.0
  %1078 = vmatprep.subr.mxu0 0.0
  %1079 = vmatpush1.msra.mxu0 0.0
  %1080 = vmatprep.subr.mxu0 0.0
  %1081 = vmatpush1.msra.mxu0 0.0
  %1082 = vmatprep.subr.mxu0 0.0
  %1083 = vmatpush1.msra.mxu0 0.0
  %1084 = vmatprep.subr.mxu0 0.0
  %1085 = vmatpush1.msra.mxu0 0.0
  %1086 = vmatprep.subr.mxu0 0.0
  %1087 = vmatpush1.msra.mxu0 0.0
  %1088 = vmatprep.subr.mxu0 0.0
  %1089 = vmatpush1.msra.mxu0 0.0
  %1090 = vmatprep.subr.mxu0 0.0
  %1091 = vmatpush1.msra.mxu0 0.0
  %1092 = vmatprep.subr.mxu0 0.0
  %1093 = vmatpush1.msra.mxu0 0.0
  %1094 = vmatprep.subr.mxu0 0.0
  %1095 = vmatpush1.msra.mxu0 0.0
  %1096 = vmatprep.subr.mxu0 0.0
  %1097 = vmatpush1.msra.mxu0 0.0
  %1098 = vmatprep.subr.mxu0 0.0
  %1099 = vmatpush1.msra.mxu0 0.0
  %1100 = vmatprep.subr.mxu0 0.0
  %1101 = vmatpush1.msra.mxu0 0.0
  %1102 = vmatprep.subr.mxu0 0.0
  %1103 = vmatpush1.msra.mxu0 0.0
  %1104 = vmatprep.subr.mxu0 0.0
  %1105 = vmatpush1.msra.mxu0 0.0
  %1106 = vmatprep.subr.mxu0 0.0
  %1107 = vmatpush1.msra.mxu0 0.0
  %1108 = vmatprep.subr.mxu0 0.0
  %1109 = vmatpush1.msra.mxu0 0.0
  %1110 = vmatprep.mubr.f32.mxu0 0.0
  %1111 = vmatmul.mubr.f32.gmra.mrb[0].mxu0 %v814
  %v1112 = vpop.f32.mrb[0].mxu0
  %v1113 = vadd.f32 0.0, %v1112
  %v1114 = vpop.f32.mrb[0].mxu0
  %1115 = vmatprep.mubr.f32.mxu0 0.0
  %1116 = vmatmul.mubr.f32.gmra.mrb[0].mxu0 %v817
  %v1117 = vpop.f32.mrb[0].mxu0
  %v1118 = vadd.f32 0.0, %v1117
  %v1119 = vpop.f32.mrb[0].mxu0
  %1120 = vmatprep.mubr.f32.mxu0 0.0
  %1121 = vmatmul.mubr.f32.gmra.mrb[0].mxu0 %v820
  %v1122 = vpop.f32.mrb[0].mxu0
  %v1123 = vadd.f32 0.0, %v1122
  %v1124 = vpop.f32.mrb[0].mxu0
  %1125 = vmatprep.mubr.f32.mxu0 0.0
  %1126 = vmatmul.mubr.f32.gmra.mrb[0].mxu0 %v823
  %v1127 = vpop.f32.mrb[0].mxu0
  %v1128 = vadd.f32 0.0, %v1127
  %v1129 = vpop.f32.mrb[0].mxu0
  %1130 = vmatprep.mubr.f32.mxu0 0.0
  %1131 = vmatmul.mubr.f32.gmra.mrb[0].mxu0 %v826
  %v1132 = vpop.f32.mrb[0].mxu0
  %v1133 = vadd.f32 0.0, %v1132
  %v1134 = vpop.f32.mrb[0].mxu0
  %1135 = vmatprep.mubr.f32.mxu0 0.0
  %1136 = vmatmul.mubr.f32.gmra.mrb[0].mxu0 %v829
  %v1137 = vpop.f32.mrb[0].mxu0
  %v1138 = vadd.f32 0.0, %v1137
  %v1139 = vpop.f32.mrb[0].mxu0
  %1140 = vmatprep.mubr.f32.mxu0 0.0
  %1141 = vmatmul.mubr.f32.gmra.mrb[0].mxu0 %v832
  %v1142 = vpop.f32.mrb[0].mxu0
  %v1143 = vadd.f32 0.0, %v1142
  %v1144 = vpop.f32.mrb[0].mxu0
  %1145 = vmatprep.mubr.f32.mxu0 0.0
  %1146 = vmatmul.mubr.f32.gmra.mrb[0].mxu0 %v835
  %v1147 = vpop.f32.mrb[0].mxu0
  %v1148 = vadd.f32 0.0, %v1147
  %v1149 = vpop.f32.mrb[0].mxu0
  %1150 = vmatprep.mubr.f32.mxu0 0.0
  %1151 = vmatmul.mubr.f32.gmra.mrb[0].mxu0 %v838
  %v1152 = vpop.f32.mrb[0].mxu0
  %v1153 = vadd.f32 0.0, %v1152
  %v1154 = vpop.f32.mrb[0].mxu0
  %1155 = vmatprep.mubr.f32.mxu0 0.0
  %1156 = vmatmul.mubr.f32.gmra.mrb[0].mxu0 %v841
  %v1157 = vpop.f32.mrb[0].mxu0
  %v1158 = vadd.f32 0.0, %v1157
  %v1159 = vpop.f32.mrb[0].mxu0
  %1160 = vmatprep.mubr.f32.mxu0 0.0
  %1161 = vmatmul.mubr.f32.gmra.mrb[0].mxu0 %v844
  %v1162 = vpop.f32.mrb[0].mxu0
  %v1163 = vadd.f32 0.0, %v1162
  %v1164 = vpop.f32.mrb[0].mxu0
  %1165 = vmatprep.mubr.f32.mxu0 0.0
  %1166 = vmatmul.mubr.f32.gmra.mrb[0].mxu0 %v847
  %v1167 = vpop.f32.mrb[0].mxu0
  %v1168 = vadd.f32 0.0, %v1167
  %v1169 = vpop.f32.mrb[0].mxu0
  %1170 = vmatprep.mubr.f32.mxu0 0.0
  %1171 = vmatmul.mubr.f32.gmra.mrb[0].mxu0 %v850
  %v1172 = vpop.f32.mrb[0].mxu0
  %v1173 = vadd.f32 0.0, %v1172
  %v1174 = vpop.f32.mrb[0].mxu0
  %1175 = vmatprep.mubr.f32.mxu0 0.0
  %1176 = vmatmul.mubr.f32.gmra.mrb[0].mxu0 %v853
  %v1177 = vpop.f32.mrb[0].mxu0
  %v1178 = vadd.f32 0.0, %v1177
  %v1179 = vpop.f32.mrb[0].mxu0
  %1180 = vmatprep.mubr.f32.mxu0 0.0
  %1181 = vmatmul.mubr.f32.gmra.mrb[0].mxu0 %v856
  %v1182 = vpop.f32.mrb[0].mxu0
  %v1183 = vadd.f32 0.0, %v1182
  %v1184 = vpop.f32.mrb[0].mxu0
  %1185 = vmatprep.mubr.f32.mxu0 0.0
  %1186 = vmatmul.mubr.f32.gmra.mrb[0].mxu0 %v859
  %v1187 = vpop.f32.mrb[0].mxu0
  %v1188 = vadd.f32 0.0, %v1187
  %v1189 = vpop.f32.mrb[0].mxu0
  %1190 = vdwg.mxu0
  %1191 = vmatprep.subr.mxu0 0.0
  %1192 = vmatpush1.msra.mxu0 %v1026
  %1193 = vmatprep.subr.mxu0 0.0
  %1194 = vmatpush1.msra.mxu0 %v1027
  %1195 = vmatprep.subr.mxu0 0.0
  %1196 = vmatpush1.msra.mxu0 %v1028
  %1197 = vmatprep.subr.mxu0 0.0
  %1198 = vmatpush1.msra.mxu0 %v1029
  %1199 = vmatprep.subr.mxu0 0.0
  %1200 = vmatpush1.msra.mxu0 %v1030
  %1201 = vmatprep.subr.mxu0 0.0
  %1202 = vmatpush1.msra.mxu0 %v1031
  %1203 = vmatprep.subr.mxu0 0.0
  %1204 = vmatpush1.msra.mxu0 %v1032
  %1205 = vmatprep.subr.mxu0 0.0
  %1206 = vmatpush1.msra.mxu0 %v1033
  %1207 = vmatprep.subr.mxu0 0.0
  %1208 = vmatpush1.msra.mxu0 %v1034
  %1209 = vmatprep.subr.mxu0 0.0
  %1210 = vmatpush1.msra.mxu0 %v1035
  %1211 = vmatprep.subr.mxu0 0.0
  %1212 = vmatpush1.msra.mxu0 %v1036
  %1213 = vmatprep.subr.mxu0 0.0
  %1214 = vmatpush1.msra.mxu0 %v1037
  %1215 = vmatprep.subr.mxu0 0.0
  %1216 = vmatpush1.msra.mxu0 %v1038
  %1217 = vmatprep.subr.mxu0 0.0
  %1218 = vmatpush1.msra.mxu0 %v1039
  %1219 = vmatprep.subr.mxu0 0.0
  %1220 = vmatpush1.msra.mxu0 %v1040
  %1221 = vmatprep.subr.mxu0 0.0
  %1222 = vmatpush1.msra.mxu0 %v1041
  %1223 = vmatprep.subr.mxu0 0.0
  %1224 = vmatpush1.msra.mxu0 0.0
  %1225 = vmatprep.subr.mxu0 0.0
  %1226 = vmatpush1.msra.mxu0 0.0
  %1227 = vmatprep.subr.mxu0 0.0
  %1228 = vmatpush1.msra.mxu0 0.0
  %1229 = vmatprep.subr.mxu0 0.0
  %1230 = vmatpush1.msra.mxu0 0.0
  %1231 = vmatprep.subr.mxu0 0.0
  %1232 = vmatpush1.msra.mxu0 0.0
  %1233 = vmatprep.subr.mxu0 0.0
  %1234 = vmatpush1.msra.mxu0 0.0
  %1235 = vmatprep.subr.mxu0 0.0
  %1236 = vmatpush1.msra.mxu0 0.0
  %1237 = vmatprep.subr.mxu0 0.0
  %1238 = vmatpush1.msra.mxu0 0.0
  %1239 = vmatprep.subr.mxu0 0.0
  %1240 = vmatpush1.msra.mxu0 0.0
  %1241 = vmatprep.subr.mxu0 0.0
  %1242 = vmatpush1.msra.mxu0 0.0
  %1243 = vmatprep.subr.mxu0 0.0
  %1244 = vmatpush1.msra.mxu0 0.0
  %1245 = vmatprep.subr.mxu0 0.0
  %1246 = vmatpush1.msra.mxu0 0.0
  %1247 = vmatprep.subr.mxu0 0.0
  %1248 = vmatpush1.msra.mxu0 0.0
  %1249 = vmatprep.subr.mxu0 0.0
  %1250 = vmatpush1.msra.mxu0 0.0
  %1251 = vmatprep.subr.mxu0 0.0
  %1252 = vmatpush1.msra.mxu0 0.0
  %1253 = vmatprep.subr.mxu0 0.0
  %1254 = vmatpush1.msra.mxu0 0.0
  %1255 = vmatprep.mubr.f32.mxu0 0.0
  %1256 = vmatmul.mubr.f32.gmra.mrb[0].mxu0 %v1010
  %v1257 = vpop.f32.mrb[0].mxu0
  %v1258 = vadd.f32 %v1113, %v1257
  %v1259 = vpop.f32.mrb[0].mxu0
  %1260 = vmatprep.mubr.f32.mxu0 0.0
  %1261 = vmatmul.mubr.f32.gmra.mrb[0].mxu0 %v1011
  %v1262 = vpop.f32.mrb[0].mxu0
  %v1263 = vadd.f32 %v1118, %v1262
  %v1264 = vpop.f32.mrb[0].mxu0
  %1265 = vmatprep.mubr.f32.mxu0 0.0
  %1266 = vmatmul.mubr.f32.gmra.mrb[0].mxu0 %v1012
  %v1267 = vpop.f32.mrb[0].mxu0
  %v1268 = vadd.f32 %v1123, %v1267
  %v1269 = vpop.f32.mrb[0].mxu0
  %1270 = vmatprep.mubr.f32.mxu0 0.0
  %1271 = vmatmul.mubr.f32.gmra.mrb[0].mxu0 %v1013
  %v1272 = vpop.f32.mrb[0].mxu0
  %v1273 = vadd.f32 %v1128, %v1272
  %v1274 = vpop.f32.mrb[0].mxu0
  %1275 = vmatprep.mubr.f32.mxu0 0.0
  %1276 = vmatmul.mubr.f32.gmra.mrb[0].mxu0 %v1014
  %v1277 = vpop.f32.mrb[0].mxu0
  %v1278 = vadd.f32 %v1133, %v1277
  %v1279 = vpop.f32.mrb[0].mxu0
  %1280 = vmatprep.mubr.f32.mxu0 0.0
  %1281 = vmatmul.mubr.f32.gmra.mrb[0].mxu0 %v1015
  %v1282 = vpop.f32.mrb[0].mxu0
  %v1283 = vadd.f32 %v1138, %v1282
  %v1284 = vpop.f32.mrb[0].mxu0
  %1285 = vmatprep.mubr.f32.mxu0 0.0
  %1286 = vmatmul.mubr.f32.gmra.mrb[0].mxu0 %v1016
  %v1287 = vpop.f32.mrb[0].mxu0
  %v1288 = vadd.f32 %v1143, %v1287
  %v1289 = vpop.f32.mrb[0].mxu0
  %1290 = vmatprep.mubr.f32.mxu0 0.0
  %1291 = vmatmul.mubr.f32.gmra.mrb[0].mxu0 %v1017
  %v1292 = vpop.f32.mrb[0].mxu0
  %v1293 = vadd.f32 %v1148, %v1292
  %v1294 = vpop.f32.mrb[0].mxu0
  %1295 = vmatprep.mubr.f32.mxu0 0.0
  %1296 = vmatmul.mubr.f32.gmra.mrb[0].mxu0 %v1018
  %v1297 = vpop.f32.mrb[0].mxu0
  %v1298 = vadd.f32 %v1153, %v1297
  %v1299 = vpop.f32.mrb[0].mxu0
  %1300 = vmatprep.mubr.f32.mxu0 0.0
  %1301 = vmatmul.mubr.f32.gmra.mrb[0].mxu0 %v1019
  %v1302 = vpop.f32.mrb[0].mxu0
  %v1303 = vadd.f32 %v1158, %v1302
  %v1304 = vpop.f32.mrb[0].mxu0
  %1305 = vmatprep.mubr.f32.mxu0 0.0
  %1306 = vmatmul.mubr.f32.gmra.mrb[0].mxu0 %v1020
  %v1307 = vpop.f32.mrb[0].mxu0
  %v1308 = vadd.f32 %v1163, %v1307
  %v1309 = vpop.f32.mrb[0].mxu0
  %1310 = vmatprep.mubr.f32.mxu0 0.0
  %1311 = vmatmul.mubr.f32.gmra.mrb[0].mxu0 %v1021
  %v1312 = vpop.f32.mrb[0].mxu0
  %v1313 = vadd.f32 %v1168, %v1312
  %v1314 = vpop.f32.mrb[0].mxu0
  %1315 = vmatprep.mubr.f32.mxu0 0.0
  %1316 = vmatmul.mubr.f32.gmra.mrb[0].mxu0 %v1022
  %v1317 = vpop.f32.mrb[0].mxu0
  %v1318 = vadd.f32 %v1173, %v1317
  %v1319 = vpop.f32.mrb[0].mxu0
  %1320 = vmatprep.mubr.f32.mxu0 0.0
  %1321 = vmatmul.mubr.f32.gmra.mrb[0].mxu0 %v1023
  %v1322 = vpop.f32.mrb[0].mxu0
  %v1323 = vadd.f32 %v1178, %v1322
  %v1324 = vpop.f32.mrb[0].mxu0
  %1325 = vmatprep.mubr.f32.mxu0 0.0
  %1326 = vmatmul.mubr.f32.gmra.mrb[0].mxu0 %v1024
  %v1327 = vpop.f32.mrb[0].mxu0
  %v1328 = vadd.f32 %v1183, %v1327
  %v1329 = vpop.f32.mrb[0].mxu0
  %1330 = vmatprep.mubr.f32.mxu0 0.0
  %1331 = vmatmul.mubr.f32.gmra.mrb[0].mxu0 %v1025
  %v1332 = vpop.f32.mrb[0].mxu0
  %v1333 = vadd.f32 %v1188, %v1332
  %v1334 = vpop.f32.mrb[0].mxu0
  %1335 = vdwg.mxu0
  %1336 = vst.msk [vmem:[%s9] sm:$0xff] %vm366, %v1258
  %1337 = vst.msk [vmem:[%s9 + $0x8] sm:$0xff] %vm366, %v1263
  %1338 = vst.msk [vmem:[%s9 + $0x10] sm:$0xff] %vm366, %v1268
  %1339 = vst.msk [vmem:[%s9 + $0x18] sm:$0xff] %vm366, %v1273
  %1340 = vst.msk [vmem:[%s9 + $0x20] sm:$0xff] %vm366, %v1278
  %1341 = vst.msk [vmem:[%s9 + $0x28] sm:$0xff] %vm366, %v1283
  %1342 = vst.msk [vmem:[%s9 + $0x30] sm:$0xff] %vm366, %v1288
  %1343 = vst.msk [vmem:[%s9 + $0x38] sm:$0xff] %vm366, %v1293
  %1344 = vst.msk [vmem:[%s9 + $0x40] sm:$0xff] %vm366, %v1298
  %1345 = vst.msk [vmem:[%s9 + $0x48] sm:$0xff] %vm366, %v1303
  %1346 = vst.msk [vmem:[%s9 + $0x50] sm:$0xff] %vm366, %v1308
  %1347 = vst.msk [vmem:[%s9 + $0x58] sm:$0xff] %vm366, %v1313
  %1348 = vst.msk [vmem:[%s9 + $0x60] sm:$0xff] %vm366, %v1318
  %1349 = vst.msk [vmem:[%s9 + $0x68] sm:$0xff] %vm366, %v1323
  %1350 = vst.msk [vmem:[%s9 + $0x70] sm:$0xff] %vm366, %v1328
  %1351 = vst.msk [vmem:[%s9 + $0x78] sm:$0xff] %vm366, %v1333
  // Predicated region
  $region38: #{tpu_custom_call.1} parent=0 // pred_check
    _
  $region39: #{tpu_custom_call.1} parent=0 // pred_check_branch
    %1353 = sbr.rel (0) target = $region41
  $region40: #{tpu_custom_call.1} parent=0 // pred_region
    _
  $region41: #{tpu_custom_call.1} parent=0 // pred_fallthru
    _
  // Predicated region
  $region42: #{tpu_custom_call.1} parent=0 // pred_check
    _
  $region43: #{tpu_custom_call.1} parent=0 // pred_check_branch
    %1355 = sbr.rel (0) target = $region45
  $region44: #{tpu_custom_call.1} parent=0 // pred_region
    _
  $region45: #{tpu_custom_call.1} parent=0 // pred_fallthru
    _

</llo_original>
